<compile_context>
chip_gen: v6e
topology: v6e:2x2x1
jax: 0.10.0
libtpu: 0.0.40
codegen_flags: <defaults>
</compile_context>

<pallas_src>
import jax
import jax.numpy as jnp
from jax.experimental import pallas as pl
from jax.experimental.pallas import tpu as pltpu

INPUT_SIZE = 28 * 28          # 784 (= 98 * 8, sublane aligned)
H1, H2, H3 = 512, 256, 128
OUTPUT_SIZE = 10
OUT_PAD = 128                 # lane-dense padded output width


def _round_up(x, m):
    return (x + m - 1) // m * m


def _mlp_kernel(x_ref, w1_ref, b1_ref, w2_ref, b2_ref,
                w3_ref, b3_ref, w4_ref, b4_ref, o_ref):
    # Layer 1: relu(x @ W1 + b1) -- cast x tile to bf16 here (no wrapper pass).
    x = x_ref[...].astype(jnp.bfloat16)
    h = jnp.dot(x, w1_ref[...], preferred_element_type=jnp.float32)
    h = jnp.maximum(h + b1_ref[...], 0.0)
    # Layer 2: relu(h @ W2 + b2)
    h = jnp.dot(h.astype(jnp.bfloat16), w2_ref[...],
                preferred_element_type=jnp.float32)
    h = jnp.maximum(h + b2_ref[...], 0.0)
    # Layer 3: relu(h @ W3 + b3)
    h = jnp.dot(h.astype(jnp.bfloat16), w3_ref[...],
                preferred_element_type=jnp.float32)
    h = jnp.maximum(h + b3_ref[...], 0.0)
    # Layer 4: h @ W4 + b4 (no activation; output lane-padded to 128 columns).
    o = jnp.dot(h.astype(jnp.bfloat16), w4_ref[...],
                preferred_element_type=jnp.float32)
    o_ref[...] = o + b4_ref[...]


def prepare_params(params):
    """One-time conversion of f32 (in, out) weights/biases into kernel layout:
    bf16 weights, W4/b4 zero-padded to 128 output lanes, f32 biases."""
    w1, b1, w2, b2, w3, b3, w4, b4 = params
    w1p = w1.astype(jnp.bfloat16)
    w2p = w2.astype(jnp.bfloat16)
    w3p = w3.astype(jnp.bfloat16)
    w4p = (jnp.zeros((H3, OUT_PAD), jnp.float32).at[:, :OUTPUT_SIZE].set(w4)
           .astype(jnp.bfloat16))
    b4p = jnp.zeros((1, OUT_PAD), jnp.float32).at[:, :OUTPUT_SIZE].set(b4)
    return (w1p, b1.astype(jnp.float32), w2p, b2.astype(jnp.float32),
            w3p, b3.astype(jnp.float32), w4p, b4p)


def _choose_batch_tile(B, batch_tile):
    bp8 = _round_up(B, 8)
    tb = min(batch_tile, bp8)
    # v7x megacore: make sure the batch-parallel grid has >= 2 steps when the
    # batch is large enough; a single-step grid would leave one TC idle.
    if B >= 512 and pl.cdiv(bp8, tb) < 2:
        tb = max(256, _round_up(pl.cdiv(bp8, 2), 256))
    return tb


def simple_mnist_forward(x_nchw, kernel_params, *, batch_tile=512):
    """x_nchw: [B, C, H, W] with C*H*W == 784.  kernel_params from
    prepare_params().  Returns logits [B, 10] (f32)."""
    B = x_nchw.shape[0]
    x = x_nchw.reshape(B, -1).astype(jnp.float32)
    assert x.shape[1] == INPUT_SIZE, x.shape

    w1p, b1, w2p, b2, w3p, b3, w4p, b4p = kernel_params

    TB = _choose_batch_tile(B, batch_tile)
    grid = (pl.cdiv(B, TB),)

    def resident(shape):
        # Same block every grid step -> stays VMEM-resident, no re-DMA.
        return pl.BlockSpec(shape, lambda i: (0, 0))

    out = pl.pallas_call(
        _mlp_kernel,
        out_shape=jax.ShapeDtypeStruct((B, OUT_PAD), jnp.float32),
        grid=grid,
        in_specs=[
            pl.BlockSpec((TB, INPUT_SIZE), lambda i: (i, 0)),   # x tile (f32)
            resident((INPUT_SIZE, H1)), resident((1, H1)),      # W1, b1
            resident((H1, H2)),         resident((1, H2)),      # W2, b2
            resident((H2, H3)),         resident((1, H3)),      # W3, b3
            resident((H3, OUT_PAD)),    resident((1, OUT_PAD)), # W4, b4 (padded)
        ],
        out_specs=pl.BlockSpec((TB, OUT_PAD), lambda i: (i, 0)),
        compiler_params=pltpu.CompilerParams(
            dimension_semantics=("parallel",),
            vmem_limit_bytes=32 << 20,
        ),
    )(x, w1p, b1, w2p, b2, w3p, b3, w4p, b4p)

    return out[:, :OUTPUT_SIZE]


def init_params(key, gain=1.0):
    """Matches the PyTorch module's __init__:
    weights ~ U(-gain*sqrt(6/fan_in), +gain*sqrt(6/fan_in)),
    biases  ~ U(-1/sqrt(fan_in), +1/sqrt(fan_in))  (PyTorch Linear default).
    Stored as (in, out) so the kernel computes x @ W  (== PyTorch x @ W.T)."""
    dims = [(INPUT_SIZE, H1), (H1, H2), (H2, H3), (H3, OUTPUT_SIZE)]
    keys = jax.random.split(key, 2 * len(dims))
    params = []
    for i, (fan_in, fan_out) in enumerate(dims):
        wb = gain * (6.0 / fan_in) ** 0.5
        bb = 1.0 / (fan_in ** 0.5)
        w = jax.random.uniform(keys[2 * i], (fan_in, fan_out), jnp.float32, -wb, wb)
        b = jax.random.uniform(keys[2 * i + 1], (1, fan_out), jnp.float32, -bb, bb)
        params += [w, b]
    return tuple(params)


def _reference_f32(x_nchw, params):
    """Pure-f32 JAX reference (PyTorch-equivalent math)."""
    w1, b1, w2, b2, w3, b3, w4, b4 = params
    x = x_nchw.reshape(x_nchw.shape[0], -1).astype(jnp.float32)
    h = jnp.maximum(x @ w1 + b1, 0.0)
    h = jnp.maximum(h @ w2 + b2, 0.0)
    h = jnp.maximum(h @ w3 + b3, 0.0)
    return h @ w4 + b4


def _reference_bf16(x_nchw, params):
    """Reference emulating the kernel's numerics (bf16 operands, f32 accum)."""
    w1, b1, w2, b2, w3, b3, w4, b4 = params

    def dot(a, w):
        return jnp.dot(a.astype(jnp.bfloat16), w.astype(jnp.bfloat16),
                       preferred_element_type=jnp.float32)

    x = x_nchw.reshape(x_nchw.shape[0], -1).astype(jnp.float32)
    h = jnp.maximum(dot(x, w1) + b1, 0.0)
    h = jnp.maximum(dot(h, w2) + b2, 0.0)
    h = jnp.maximum(dot(h, w3) + b3, 0.0)
    return dot(h, w4) + b4


if __name__ == "__main__":
    key = jax.random.PRNGKey(0)
    pkey, xkey = jax.random.split(key)
    params = init_params(pkey, gain=1.0)
    kparams = prepare_params(params)   # one-time weight layout / bf16 cast

    # MNIST-like input: NCHW, batch=2, 1 channel, 28x28 (fc1 requires 784 features).
    x = jax.random.normal(xkey, (2, 1, 28, 28), dtype=jnp.float32)

    logits = simple_mnist_forward(x, kparams)
    logits = jax.block_until_ready(logits)
    assert logits.shape == (2, OUTPUT_SIZE)

    # Exact-numerics check against a bf16-operand / f32-accum reference.
    ref_bf16 = _reference_bf16(x, params)
    assert jnp.allclose(logits, ref_bf16, atol=2e-3, rtol=2e-3), (
        jnp.max(jnp.abs(logits - ref_bf16)))

    # Looser sanity check against the pure-f32 PyTorch-equivalent math.
    ref_f32 = _reference_f32(x, params)
    assert jnp.allclose(logits, ref_f32, atol=1e-1, rtol=1e-1), (
        jnp.max(jnp.abs(logits - ref_f32)))

    print("KERNEL_OK")
</pallas_src>

<mosaic_0001>
module attributes {stable_mosaic.version = 11 : i64} {
  func.func @_mlp_kernel(%arg0: i32, %arg1: memref<8x784xf32, #tpu.memory_space<vmem>>, %arg2: memref<784x512xbf16, #tpu.memory_space<vmem>>, %arg3: memref<1x512xf32, #tpu.memory_space<vmem>>, %arg4: memref<512x256xbf16, #tpu.memory_space<vmem>>, %arg5: memref<1x256xf32, #tpu.memory_space<vmem>>, %arg6: memref<256x128xbf16, #tpu.memory_space<vmem>>, %arg7: memref<1x128xf32, #tpu.memory_space<vmem>>, %arg8: memref<128x128xbf16, #tpu.memory_space<vmem>>, %arg9: memref<1x128xf32, #tpu.memory_space<vmem>>, %arg10: memref<8x128xf32, #tpu.memory_space<vmem>>) attributes {dimension_semantics = [#tpu.dimension_semantics<parallel>], iteration_bounds = array<i64: 1>, scalar_prefetch = 0 : i64, scratch_operands = 0 : i64, tpu.core_type = #tpu.core_type<tc>, window_params = [{transform_indices = @transform_0, window_bounds = array<i64: 8, 784>}, {pipeline_mode = #tpu.pipeline_mode<synchronous>, transform_indices = @transform_1, window_bounds = array<i64: 784, 512>}, {pipeline_mode = #tpu.pipeline_mode<synchronous>, transform_indices = @transform_2, window_bounds = array<i64: 1, 512>}, {pipeline_mode = #tpu.pipeline_mode<synchronous>, transform_indices = @transform_3, window_bounds = array<i64: 512, 256>}, {pipeline_mode = #tpu.pipeline_mode<synchronous>, transform_indices = @transform_4, window_bounds = array<i64: 1, 256>}, {pipeline_mode = #tpu.pipeline_mode<synchronous>, transform_indices = @transform_5, window_bounds = array<i64: 256, 128>}, {pipeline_mode = #tpu.pipeline_mode<synchronous>, transform_indices = @transform_6, window_bounds = array<i64: 1, 128>}, {pipeline_mode = #tpu.pipeline_mode<synchronous>, transform_indices = @transform_7, window_bounds = array<i64: 128, 128>}, {pipeline_mode = #tpu.pipeline_mode<synchronous>, transform_indices = @transform_8, window_bounds = array<i64: 1, 128>}, {transform_indices = @transform_9, window_bounds = array<i64: 8, 128>}]} {
    %c0 = arith.constant 0 : index
    %c0_0 = arith.constant 0 : index
    %0 = vector.load %arg1[%c0, %c0_0] : memref<8x784xf32, #tpu.memory_space<vmem>>, vector<8x784xf32>
    %1 = arith.truncf %0 : vector<8x784xf32> to vector<8x784xbf16>
    %c0_1 = arith.constant 0 : index
    %c0_2 = arith.constant 0 : index
    %2 = vector.load %arg2[%c0_1, %c0_2] : memref<784x512xbf16, #tpu.memory_space<vmem>>, vector<784x512xbf16>
    %cst = arith.constant dense<0.000000e+00> : vector<8x512xf32>
    %3 = tpu.matmul %1, %2, %cst {dimension_numbers = #tpu.dot_dimension_numbers<[1], [0], [0], [1], [0, 0, 1, 1], [], []>} : vector<8x784xbf16>, vector<784x512xbf16>, vector<8x512xf32> -> vector<8x512xf32>
    %c0_3 = arith.constant 0 : index
    %c0_4 = arith.constant 0 : index
    %4 = vector.load %arg3[%c0_3, %c0_4] : memref<1x512xf32, #tpu.memory_space<vmem>>, vector<1x512xf32>
    %5 = vector.broadcast %4 : vector<1x512xf32> to vector<8x512xf32>
    %6 = arith.addf %3, %5 : vector<8x512xf32>
    %cst_5 = arith.constant 0.000000e+00 : f32
    %7 = vector.broadcast %cst_5 : f32 to vector<8x512xf32>
    %8 = arith.maximumf %6, %7 : vector<8x512xf32>
    %9 = arith.truncf %8 : vector<8x512xf32> to vector<8x512xbf16>
    %c0_6 = arith.constant 0 : index
    %c0_7 = arith.constant 0 : index
    %10 = vector.load %arg4[%c0_6, %c0_7] : memref<512x256xbf16, #tpu.memory_space<vmem>>, vector<512x256xbf16>
    %cst_8 = arith.constant dense<0.000000e+00> : vector<8x256xf32>
    %11 = tpu.matmul %9, %10, %cst_8 {dimension_numbers = #tpu.dot_dimension_numbers<[1], [0], [0], [1], [0, 0, 1, 1], [], []>} : vector<8x512xbf16>, vector<512x256xbf16>, vector<8x256xf32> -> vector<8x256xf32>
    %c0_9 = arith.constant 0 : index
    %c0_10 = arith.constant 0 : index
    %12 = vector.load %arg5[%c0_9, %c0_10] : memref<1x256xf32, #tpu.memory_space<vmem>>, vector<1x256xf32>
    %13 = vector.broadcast %12 : vector<1x256xf32> to vector<8x256xf32>
    %14 = arith.addf %11, %13 : vector<8x256xf32>
    %cst_11 = arith.constant 0.000000e+00 : f32
    %15 = vector.broadcast %cst_11 : f32 to vector<8x256xf32>
    %16 = arith.maximumf %14, %15 : vector<8x256xf32>
    %17 = arith.truncf %16 : vector<8x256xf32> to vector<8x256xbf16>
    %c0_12 = arith.constant 0 : index
    %c0_13 = arith.constant 0 : index
    %18 = vector.load %arg6[%c0_12, %c0_13] : memref<256x128xbf16, #tpu.memory_space<vmem>>, vector<256x128xbf16>
    %cst_14 = arith.constant dense<0.000000e+00> : vector<8x128xf32>
    %19 = tpu.matmul %17, %18, %cst_14 {dimension_numbers = #tpu.dot_dimension_numbers<[1], [0], [0], [1], [0, 0, 1, 1], [], []>} : vector<8x256xbf16>, vector<256x128xbf16>, vector<8x128xf32> -> vector<8x128xf32>
    %c0_15 = arith.constant 0 : index
    %c0_16 = arith.constant 0 : index
    %20 = vector.load %arg7[%c0_15, %c0_16] : memref<1x128xf32, #tpu.memory_space<vmem>>, vector<1x128xf32>
    %21 = vector.broadcast %20 : vector<1x128xf32> to vector<8x128xf32>
    %22 = arith.addf %19, %21 : vector<8x128xf32>
    %cst_17 = arith.constant 0.000000e+00 : f32
    %23 = vector.broadcast %cst_17 : f32 to vector<8x128xf32>
    %24 = arith.maximumf %22, %23 : vector<8x128xf32>
    %25 = arith.truncf %24 : vector<8x128xf32> to vector<8x128xbf16>
    %c0_18 = arith.constant 0 : index
    %c0_19 = arith.constant 0 : index
    %26 = vector.load %arg8[%c0_18, %c0_19] : memref<128x128xbf16, #tpu.memory_space<vmem>>, vector<128x128xbf16>
    %cst_20 = arith.constant dense<0.000000e+00> : vector<8x128xf32>
    %27 = tpu.matmul %25, %26, %cst_20 {dimension_numbers = #tpu.dot_dimension_numbers<[1], [0], [0], [1], [0, 0, 1, 1], [], []>} : vector<8x128xbf16>, vector<128x128xbf16>, vector<8x128xf32> -> vector<8x128xf32>
    %c0_21 = arith.constant 0 : index
    %c0_22 = arith.constant 0 : index
    %28 = vector.load %arg9[%c0_21, %c0_22] : memref<1x128xf32, #tpu.memory_space<vmem>>, vector<1x128xf32>
    %29 = vector.broadcast %28 : vector<1x128xf32> to vector<8x128xf32>
    %30 = arith.addf %27, %29 : vector<8x128xf32>
    %c0_23 = arith.constant 0 : index
    %c0_24 = arith.constant 0 : index
    %31 = vector.load %arg10[%c0_23, %c0_24] : memref<8x128xf32, #tpu.memory_space<vmem>>, vector<8x128xf32>
    tpu.vector_store %arg10[%c0_23, %c0_24], %30 {strides = array<i32>} : memref<8x128xf32, #tpu.memory_space<vmem>>, vector<8x128xf32>,
    return
  }
  func.func @transform_0(%arg0: i32) -> (i32, i32) {
    %c0_i32 = arith.constant 0 : i32
    %c0_i32_0 = arith.constant 0 : i32
    return %arg0, %c0_i32 : i32, i32
  }
  func.func @transform_1(%arg0: i32) -> (i32, i32) {
    %c0_i32 = arith.constant 0 : i32
    %c0_i32_0 = arith.constant 0 : i32
    %c0_i32_1 = arith.constant 0 : i32
    return %c0_i32, %c0_i32_0 : i32, i32
  }
  func.func @transform_2(%arg0: i32) -> (i32, i32) {
    %c0_i32 = arith.constant 0 : i32
    %c0_i32_0 = arith.constant 0 : i32
    %c0_i32_1 = arith.constant 0 : i32
    return %c0_i32, %c0_i32_0 : i32, i32
  }
  func.func @transform_3(%arg0: i32) -> (i32, i32) {
    %c0_i32 = arith.constant 0 : i32
    %c0_i32_0 = arith.constant 0 : i32
    %c0_i32_1 = arith.constant 0 : i32
    return %c0_i32, %c0_i32_0 : i32, i32
  }
  func.func @transform_4(%arg0: i32) -> (i32, i32) {
    %c0_i32 = arith.constant 0 : i32
    %c0_i32_0 = arith.constant 0 : i32
    %c0_i32_1 = arith.constant 0 : i32
    return %c0_i32, %c0_i32_0 : i32, i32
  }
  func.func @transform_5(%arg0: i32) -> (i32, i32) {
    %c0_i32 = arith.constant 0 : i32
    %c0_i32_0 = arith.constant 0 : i32
    %c0_i32_1 = arith.constant 0 : i32
    return %c0_i32, %c0_i32_0 : i32, i32
  }
  func.func @transform_6(%arg0: i32) -> (i32, i32) {
    %c0_i32 = arith.constant 0 : i32
    %c0_i32_0 = arith.constant 0 : i32
    %c0_i32_1 = arith.constant 0 : i32
    return %c0_i32, %c0_i32_0 : i32, i32
  }
  func.func @transform_7(%arg0: i32) -> (i32, i32) {
    %c0_i32 = arith.constant 0 : i32
    %c0_i32_0 = arith.constant 0 : i32
    %c0_i32_1 = arith.constant 0 : i32
    return %c0_i32, %c0_i32_0 : i32, i32
  }
  func.func @transform_8(%arg0: i32) -> (i32, i32) {
    %c0_i32 = arith.constant 0 : i32
    %c0_i32_0 = arith.constant 0 : i32
    %c0_i32_1 = arith.constant 0 : i32
    return %c0_i32, %c0_i32_0 : i32, i32
  }
  func.func @transform_9(%arg0: i32) -> (i32, i32) {
    %c0_i32 = arith.constant 0 : i32
    %c0_i32_0 = arith.constant 0 : i32
    return %arg0, %c0_i32 : i32, i32
  }
}

</mosaic_0001>

<llo_original>
// kernel: tpu_custom_call.1
$region0: #{tpu_custom_call.1}
  #allocation0 [shape = 'u32[]', space=smem, size = 0x4, offset = 0x4, fixed_abs, tag = 'smem constant byte address 0x4 - core index']
  #allocation1 [shape = 'u32[144,128]{1,0:T(1,128)}', space=vmem, size = 0x12000, scoped, tag = 'internal scratch']
  %s0 = inlined_call_operand.hbm [shape: f32[2,784], index: 0, kind: input, shape index: {}]
  %s1 = inlined_call_operand.hbm [shape: bf16[784,512], index: 1, kind: input, shape index: {}]
  %s2 = inlined_call_operand.hbm [shape: f32[1,512], index: 2, kind: input, shape index: {}]
  %s3 = inlined_call_operand.hbm [shape: bf16[512,256], index: 3, kind: input, shape index: {}]
  %s4 = inlined_call_operand.vmem [shape: f32[1,256], index: 4, kind: input, shape index: {}]
  %s5 = inlined_call_operand.hbm [shape: bf16[256,128], index: 5, kind: input, shape index: {}]
  %s6 = inlined_call_operand.vmem [shape: f32[1,128], index: 6, kind: input, shape index: {}]
  %s7 = inlined_call_operand.hbm [shape: bf16[128,128], index: 7, kind: input, shape index: {}]
  %s8 = inlined_call_operand.vmem [shape: f32[1,128], index: 8, kind: input, shape index: {}]
  %s9 = inlined_call_operand.hbm [shape: f32[2,128], index: 9, kind: output, shape index: {}]
  %s10 = sld [smem:[#allocation0]]
  $region70: #{tpu_custom_call.1} parent=0
    _
  %s12 = ssub.s32 1, %s10
  %s13 = scalar_select 0, %s12, %s10
  $region1: #{tpu_custom_call.1} parent=0
    #allocation2 [shape = 'u8[28672]{0}', space=vmem, size = 0x7000, scoped, tag = 'input window, operand 0, single buffered']
    #allocation3 [shape = 's32[1]{0}', space=sflag, size = 0x4, scoped, tag = 'scoped memory for tpu_custom_call.1']
    #allocation4 [shape = 's32[1]{0}', space=sflag, size = 0x4, scoped, tag = 'scoped memory for tpu_custom_call.1']
    #allocation5 [shape = 'u8[802816]{0}', space=vmem, size = 0xc4000, scoped, tag = 'input window, operand 1, single buffered']
    #allocation6 [shape = 's32[1]{0}', space=sflag, size = 0x4, scoped, tag = 'scoped memory for tpu_custom_call.1']
    #allocation7 [shape = 'u8[2048]{0}', space=vmem, size = 0x800, scoped, tag = 'input window, operand 2, single buffered']
    #allocation8 [shape = 'u8[262144]{0}', space=vmem, size = 0x40000, scoped, tag = 'input window, operand 3, single buffered']
    #allocation9 [shape = 's32[1]{0}', space=sflag, size = 0x4, scoped, tag = 'scoped memory for tpu_custom_call.1']
    #allocation10 [shape = 'u8[65536]{0}', space=vmem, size = 0x10000, scoped, tag = 'input window, operand 5, single buffered']
    #allocation11 [shape = 'u8[32768]{0}', space=vmem, size = 0x8000, scoped, tag = 'input window, operand 7, single buffered']
    #allocation12 [shape = 's32[1]{0}', space=sflag, size = 0x4, scoped, tag = 'scoped memory for tpu_custom_call.1']
    #allocation13 [shape = 'u8[4096]{0}', space=vmem, size = 0x1000, scoped, tag = 'output window, operand 0, single buffered']
    %14 = vsyncpa [#allocation3], 0
    %15 = vsyncpa [#allocation6], 0
    %16 = vsyncpa [#allocation9], 0
    %17 = vsyncpa [#allocation12], 0
    %18 = vsyncpa [#allocation4], 0
    // Predicated region
    $region2: #{tpu_custom_call.1} parent=1 // pred_check
      _
    $region3: #{tpu_custom_call.1} parent=1 // pred_check_branch
      %20 = sbr.rel (0) target = $region5
    $region4: #{tpu_custom_call.1} parent=1 // pred_region
      %s22 = ssub.s32 896, 224
      %23 = vsyncadd [#allocation3], %s22
      %s24 = sshll.u32 [#allocation2], 4
      %s25 = int_to_ptr.vmem [resolvable:$true] %s24
      %30 = dma.hbm_to_vmem [thread:$0]  %s0, 224, %s25, [#allocation3], 224, 224, 14
    $region5: #{tpu_custom_call.1} parent=1 // pred_fallthru
      _
    // Predicated region
    $region6: #{tpu_custom_call.1} parent=1 // pred_check
      _
    $region7: #{tpu_custom_call.1} parent=1 // pred_check_branch
      %32 = sbr.rel (0) target = $region9
    $region8: #{tpu_custom_call.1} parent=1 // pred_region
      %s34 = ssub.s32 25088, 25088
      %35 = vsyncadd [#allocation6], %s34
      %s36 = sshll.u32 [#allocation5], 4
      %s37 = int_to_ptr.vmem [resolvable:$true] %s36
      %42 = dma.hbm_to_vmem [thread:$0]  %s1, 25088, %s37, [#allocation6], 256, 256, 16
    $region9: #{tpu_custom_call.1} parent=1 // pred_fallthru
      _
    // Predicated region
    $region10: #{tpu_custom_call.1} parent=1 // pred_check
      _
    $region11: #{tpu_custom_call.1} parent=1 // pred_check_branch
      %44 = sbr.rel (0) target = $region13
    $region12: #{tpu_custom_call.1} parent=1 // pred_region
      %s46 = ssub.s32 64, 64
      %47 = vsyncadd [#allocation6], %s46
      %s49 = sshll.u32 [#allocation7], 4
      %s50 = int_to_ptr.vmem [resolvable:$true] %s49
      %52 = dma.hbm_to_vmem [thread:$0]  %s2, 64, %s50, [#allocation6]
    $region13: #{tpu_custom_call.1} parent=1 // pred_fallthru
      _
    // Predicated region
    $region14: #{tpu_custom_call.1} parent=1 // pred_check
      _
    $region15: #{tpu_custom_call.1} parent=1 // pred_check_branch
      %54 = sbr.rel (0) target = $region17
    $region16: #{tpu_custom_call.1} parent=1 // pred_region
      %s56 = ssub.s32 8192, 8192
      %57 = vsyncadd [#allocation9], %s56
      %s58 = sshll.u32 [#allocation8], 4
      %s59 = int_to_ptr.vmem [resolvable:$true] %s58
      %64 = dma.hbm_to_vmem [thread:$0]  %s3, 8192, %s59, [#allocation9], 128, 128, 8
    $region17: #{tpu_custom_call.1} parent=1 // pred_fallthru
      _
    // Predicated region
    $region18: #{tpu_custom_call.1} parent=1 // pred_check
      _
    $region19: #{tpu_custom_call.1} parent=1 // pred_check_branch
      %66 = sbr.rel (0) target = $region21
    $region20: #{tpu_custom_call.1} parent=1 // pred_region
      _
    $region21: #{tpu_custom_call.1} parent=1 // pred_fallthru
      _
    // Predicated region
    $region22: #{tpu_custom_call.1} parent=1 // pred_check
      _
    $region23: #{tpu_custom_call.1} parent=1 // pred_check_branch
      %68 = sbr.rel (0) target = $region25
    $region24: #{tpu_custom_call.1} parent=1 // pred_region
      %s70 = ssub.s32 2048, 2048
      %71 = vsyncadd [#allocation9], %s70
      %s72 = sshll.u32 [#allocation10], 4
      %s73 = int_to_ptr.vmem [resolvable:$true] %s72
      %78 = dma.hbm_to_vmem [thread:$0]  %s5, 2048, %s73, [#allocation9], 64, 64, 4
    $region25: #{tpu_custom_call.1} parent=1 // pred_fallthru
      _
    // Predicated region
    $region26: #{tpu_custom_call.1} parent=1 // pred_check
      _
    $region27: #{tpu_custom_call.1} parent=1 // pred_check_branch
      %80 = sbr.rel (0) target = $region29
    $region28: #{tpu_custom_call.1} parent=1 // pred_region
      _
    $region29: #{tpu_custom_call.1} parent=1 // pred_fallthru
      _
    // Predicated region
    $region30: #{tpu_custom_call.1} parent=1 // pred_check
      _
    $region31: #{tpu_custom_call.1} parent=1 // pred_check_branch
      %82 = sbr.rel (0) target = $region33
    $region32: #{tpu_custom_call.1} parent=1 // pred_region
      %s84 = ssub.s32 1024, 1024
      %85 = vsyncadd [#allocation12], %s84
      %s86 = sshll.u32 [#allocation11], 4
      %s87 = int_to_ptr.vmem [resolvable:$true] %s86
      %92 = dma.hbm_to_vmem [thread:$0]  %s7, 1024, %s87, [#allocation12], 64, 64, 4
    $region33: #{tpu_custom_call.1} parent=1 // pred_fallthru
      _
    // Predicated region
    $region34: #{tpu_custom_call.1} parent=1 // pred_check
      _
    $region35: #{tpu_custom_call.1} parent=1 // pred_check_branch
      %94 = sbr.rel (0) target = $region37
    $region36: #{tpu_custom_call.1} parent=1 // pred_region
      _
    $region37: #{tpu_custom_call.1} parent=1 // pred_fallthru
      _
    // Predicated region
    $region38: #{tpu_custom_call.1} parent=1 // pred_check
      _
    $region39: #{tpu_custom_call.1} parent=1 // pred_check_branch
      %96 = sbr.rel (0) target = $region41
    $region40: #{tpu_custom_call.1} parent=1 // pred_region
      %97 = dma.done [#allocation3], 896
    $region41: #{tpu_custom_call.1} parent=1 // pred_fallthru
      _
    // Predicated region
    $region42: #{tpu_custom_call.1} parent=1 // pred_check
      _
    $region43: #{tpu_custom_call.1} parent=1 // pred_check_branch
      %99 = sbr.rel (0) target = $region45
    $region44: #{tpu_custom_call.1} parent=1 // pred_region
      %100 = dma.done [#allocation6], 25088
    $region45: #{tpu_custom_call.1} parent=1 // pred_fallthru
      _
    // Predicated region
    $region46: #{tpu_custom_call.1} parent=1 // pred_check
      _
    $region47: #{tpu_custom_call.1} parent=1 // pred_check_branch
      %102 = sbr.rel (0) target = $region49
    $region48: #{tpu_custom_call.1} parent=1 // pred_region
      %103 = dma.done [#allocation6], 64
    $region49: #{tpu_custom_call.1} parent=1 // pred_fallthru
      _
    // Predicated region
    $region50: #{tpu_custom_call.1} parent=1 // pred_check
      _
    $region51: #{tpu_custom_call.1} parent=1 // pred_check_branch
      %105 = sbr.rel (0) target = $region53
    $region52: #{tpu_custom_call.1} parent=1 // pred_region
      %106 = dma.done [#allocation9], 8192
    $region53: #{tpu_custom_call.1} parent=1 // pred_fallthru
      _
    // Predicated region
    $region54: #{tpu_custom_call.1} parent=1 // pred_check
      _
    $region55: #{tpu_custom_call.1} parent=1 // pred_check_branch
      %108 = sbr.rel (0) target = $region57
    $region56: #{tpu_custom_call.1} parent=1 // pred_region
      %109 = dma.done [#allocation9], 2048
    $region57: #{tpu_custom_call.1} parent=1 // pred_fallthru
      _
    // Predicated region
    $region58: #{tpu_custom_call.1} parent=1 // pred_check
      _
    $region59: #{tpu_custom_call.1} parent=1 // pred_check_branch
      %111 = sbr.rel (0) target = $region61
    $region60: #{tpu_custom_call.1} parent=1 // pred_region
      %112 = dma.done [#allocation12], 1024
    $region61: #{tpu_custom_call.1} parent=1 // pred_fallthru
      _
    %v114 = vld [vmem:[#allocation2] sm:$0xff]
    %v115 = vld [vmem:[#allocation2 + $0x8] sm:$0x3f]
    %v116 = vld [vmem:[#allocation2 + $0xe] sm:$0xff]
    %v117 = vld [vmem:[#allocation2 + $0x16] sm:$0x3f]
    %v118 = vld [vmem:[#allocation2 + $0x1c] sm:$0xff]
    %v119 = vld [vmem:[#allocation2 + $0x24] sm:$0x3f]
    %v120 = vld [vmem:[#allocation2 + $0x2a] sm:$0xff]
    %v121 = vld [vmem:[#allocation2 + $0x32] sm:$0x3f]
    %v130 = vcombine.low %v114, %v116
    %v131 = vcombine.high %v114, %v116
    %v132 = vcombine.low %v118, %v120
    %v133 = vcombine.high %v118, %v120
    %v135 = vunpack.c.l.s4 1983009808
    %v136 = vunpack.c.0.s8 %v135
    %v137 = vlaneseq
    %v138 = vshrl.u32 %v137, 7
    %v139 = vsub.s32 %v136, %v138
    %v140 = vrot.slane %v130, %v139
    %v142 = vunpack.c.l.s4 1983009808
    %v143 = vunpack.c.0.s8 %v142
    %v144 = vlaneseq
    %v145 = vshrl.u32 %v144, 7
    %v146 = vsub.s32 %v143, %v145
    %v147 = vrot.slane %v131, %v146
    %v149 = vunpack.c.l.s4 1983009808
    %v150 = vunpack.c.0.s8 %v149
    %v151 = vlaneseq
    %v152 = vshrl.u32 %v151, 7
    %v153 = vsub.s32 %v150, %v152
    %v154 = vrot.slane %v132, %v153
    %v156 = vunpack.c.l.s4 1983009808
    %v157 = vunpack.c.0.s8 %v156
    %v158 = vlaneseq
    %v159 = vshrl.u32 %v158, 7
    %v160 = vsub.s32 %v157, %v159
    %v161 = vrot.slane %v133, %v160
    %v162 = vcombine.low %v140, %v154
    %v163 = vcombine.high %v140, %v154
    %v164 = vcombine.low %v147, %v161
    %v165 = vcombine.high %v147, %v161
    %v166 = vcombine.low %v115, %v117
    %v167 = vcombine.high %v115, %v117
    %v168 = vcombine.low %v119, %v121
    %v169 = vcombine.high %v119, %v121
    %v171 = vunpack.c.l.s4 1983009808
    %v172 = vunpack.c.0.s8 %v171
    %v173 = vlaneseq
    %v174 = vshrl.u32 %v173, 7
    %v175 = vsub.s32 %v172, %v174
    %v176 = vrot.slane %v166, %v175
    %v178 = vunpack.c.l.s4 1983009808
    %v179 = vunpack.c.0.s8 %v178
    %v180 = vlaneseq
    %v181 = vshrl.u32 %v180, 7
    %v182 = vsub.s32 %v179, %v181
    %v183 = vrot.slane %v167, %v182
    %v185 = vunpack.c.l.s4 1983009808
    %v186 = vunpack.c.0.s8 %v185
    %v187 = vlaneseq
    %v188 = vshrl.u32 %v187, 7
    %v189 = vsub.s32 %v186, %v188
    %v190 = vrot.slane %v168, %v189
    %v192 = vunpack.c.l.s4 1983009808
    %v193 = vunpack.c.0.s8 %v192
    %v194 = vlaneseq
    %v195 = vshrl.u32 %v194, 7
    %v196 = vsub.s32 %v193, %v195
    %v197 = vrot.slane %v169, %v196
    %v198 = vcombine.low %v176, %v190
    %v199 = vcombine.high %v176, %v190
    %v200 = vcombine.low %v183, %v197
    %v208 = vpack.c.bf16 %v162, %v162
    %v209 = vpack.c.bf16 %v163, %v163
    %v210 = vpack.c.bf16 %v164, %v164
    %v211 = vpack.c.bf16 %v165, %v165
    %v212 = vpack.c.bf16 %v198, %v198
    %v213 = vpack.c.bf16 %v199, %v199
    %v214 = vpack.c.bf16 %v200, %v200
    %v215 = vld [vmem:[#allocation5] sm:$0xff]
    %v216 = vld [vmem:[#allocation5 + $0x8] sm:$0xff]
    %v217 = vld [vmem:[#allocation5 + $0x10] sm:$0xff]
    %v218 = vld [vmem:[#allocation5 + $0x18] sm:$0xff]
    %v219 = vld [vmem:[#allocation5 + $0x20] sm:$0xff]
    %v220 = vld [vmem:[#allocation5 + $0x28] sm:$0xff]
    %v221 = vld [vmem:[#allocation5 + $0x30] sm:$0xff]
    %v222 = vld [vmem:[#allocation5 + $0x38] sm:$0xff]
    %v223 = vld [vmem:[#allocation5 + $0x40] sm:$0xff]
    %v224 = vld [vmem:[#allocation5 + $0x48] sm:$0xff]
    %v225 = vld [vmem:[#allocation5 + $0x50] sm:$0xff]
    %v226 = vld [vmem:[#allocation5 + $0x58] sm:$0xff]
    %v227 = vld [vmem:[#allocation5 + $0x60] sm:$0xff]
    %v228 = vld [vmem:[#allocation5 + $0x68] sm:$0xff]
    %v229 = vld [vmem:[#allocation5 + $0x70] sm:$0xff]
    %v230 = vld [vmem:[#allocation5 + $0x78] sm:$0xff]
    %v231 = vld [vmem:[#allocation5 + $0x80] sm:$0xff]
    %v232 = vld [vmem:[#allocation5 + $0x88] sm:$0xff]
    %v233 = vld [vmem:[#allocation5 + $0x90] sm:$0xff]
    %v234 = vld [vmem:[#allocation5 + $0x98] sm:$0xff]
    %v235 = vld [vmem:[#allocation5 + $0xa0] sm:$0xff]
    %v236 = vld [vmem:[#allocation5 + $0xa8] sm:$0xff]
    %v237 = vld [vmem:[#allocation5 + $0xb0] sm:$0xff]
    %v238 = vld [vmem:[#allocation5 + $0xb8] sm:$0xff]
    %v239 = vld [vmem:[#allocation5 + $0xc0] sm:$0xff]
    %v240 = vld [vmem:[#allocation5 + $0xc8] sm:$0xff]
    %v241 = vld [vmem:[#allocation5 + $0xd0] sm:$0xff]
    %v242 = vld [vmem:[#allocation5 + $0xd8] sm:$0xff]
    %v243 = vld [vmem:[#allocation5 + $0xe0] sm:$0xff]
    %v244 = vld [vmem:[#allocation5 + $0xe8] sm:$0xff]
    %v245 = vld [vmem:[#allocation5 + $0xf0] sm:$0xff]
    %v246 = vld [vmem:[#allocation5 + $0xf8] sm:$0xff]
    %v247 = vld [vmem:[#allocation5 + $0x100] sm:$0xff]
    %v248 = vld [vmem:[#allocation5 + $0x108] sm:$0xff]
    %v249 = vld [vmem:[#allocation5 + $0x110] sm:$0xff]
    %v250 = vld [vmem:[#allocation5 + $0x118] sm:$0xff]
    %v251 = vld [vmem:[#allocation5 + $0x120] sm:$0xff]
    %v252 = vld [vmem:[#allocation5 + $0x128] sm:$0xff]
    %v253 = vld [vmem:[#allocation5 + $0x130] sm:$0xff]
    %v254 = vld [vmem:[#allocation5 + $0x138] sm:$0xff]
    %v255 = vld [vmem:[#allocation5 + $0x140] sm:$0xff]
    %v256 = vld [vmem:[#allocation5 + $0x148] sm:$0xff]
    %v257 = vld [vmem:[#allocation5 + $0x150] sm:$0xff]
    %v258 = vld [vmem:[#allocation5 + $0x158] sm:$0xff]
    %v259 = vld [vmem:[#allocation5 + $0x160] sm:$0xff]
    %v260 = vld [vmem:[#allocation5 + $0x168] sm:$0xff]
    %v261 = vld [vmem:[#allocation5 + $0x170] sm:$0xff]
    %v262 = vld [vmem:[#allocation5 + $0x178] sm:$0xff]
    %v263 = vld [vmem:[#allocation5 + $0x180] sm:$0xff]
    %v264 = vld [vmem:[#allocation5 + $0x188] sm:$0xff]
    %v265 = vld [vmem:[#allocation5 + $0x190] sm:$0xff]
    %v266 = vld [vmem:[#allocation5 + $0x198] sm:$0xff]
    %v267 = vld [vmem:[#allocation5 + $0x1a0] sm:$0xff]
    %v268 = vld [vmem:[#allocation5 + $0x1a8] sm:$0xff]
    %v269 = vld [vmem:[#allocation5 + $0x1b0] sm:$0xff]
    %v270 = vld [vmem:[#allocation5 + $0x1b8] sm:$0xff]
    %v271 = vld [vmem:[#allocation5 + $0x1c0] sm:$0xff]
    %v272 = vld [vmem:[#allocation5 + $0x1c8] sm:$0xff]
    %v273 = vld [vmem:[#allocation5 + $0x1d0] sm:$0xff]
    %v274 = vld [vmem:[#allocation5 + $0x1d8] sm:$0xff]
    %v275 = vld [vmem:[#allocation5 + $0x1e0] sm:$0xff]
    %v276 = vld [vmem:[#allocation5 + $0x1e8] sm:$0xff]
    %v277 = vld [vmem:[#allocation5 + $0x1f0] sm:$0xff]
    %v278 = vld [vmem:[#allocation5 + $0x1f8] sm:$0xff]
    %v279 = vld [vmem:[#allocation5 + $0x200] sm:$0xff]
    %v280 = vld [vmem:[#allocation5 + $0x208] sm:$0xff]
    %v281 = vld [vmem:[#allocation5 + $0x210] sm:$0xff]
    %v282 = vld [vmem:[#allocation5 + $0x218] sm:$0xff]
    %v283 = vld [vmem:[#allocation5 + $0x220] sm:$0xff]
    %v284 = vld [vmem:[#allocation5 + $0x228] sm:$0xff]
    %v285 = vld [vmem:[#allocation5 + $0x230] sm:$0xff]
    %v286 = vld [vmem:[#allocation5 + $0x238] sm:$0xff]
    %v287 = vld [vmem:[#allocation5 + $0x240] sm:$0xff]
    %v288 = vld [vmem:[#allocation5 + $0x248] sm:$0xff]
    %v289 = vld [vmem:[#allocation5 + $0x250] sm:$0xff]
    %v290 = vld [vmem:[#allocation5 + $0x258] sm:$0xff]
    %v291 = vld [vmem:[#allocation5 + $0x260] sm:$0xff]
    %v292 = vld [vmem:[#allocation5 + $0x268] sm:$0xff]
    %v293 = vld [vmem:[#allocation5 + $0x270] sm:$0xff]
    %v294 = vld [vmem:[#allocation5 + $0x278] sm:$0xff]
    %v295 = vld [vmem:[#allocation5 + $0x280] sm:$0xff]
    %v296 = vld [vmem:[#allocation5 + $0x288] sm:$0xff]
    %v297 = vld [vmem:[#allocation5 + $0x290] sm:$0xff]
    %v298 = vld [vmem:[#allocation5 + $0x298] sm:$0xff]
    %v299 = vld [vmem:[#allocation5 + $0x2a0] sm:$0xff]
    %v300 = vld [vmem:[#allocation5 + $0x2a8] sm:$0xff]
    %v301 = vld [vmem:[#allocation5 + $0x2b0] sm:$0xff]
    %v302 = vld [vmem:[#allocation5 + $0x2b8] sm:$0xff]
    %v303 = vld [vmem:[#allocation5 + $0x2c0] sm:$0xff]
    %v304 = vld [vmem:[#allocation5 + $0x2c8] sm:$0xff]
    %v305 = vld [vmem:[#allocation5 + $0x2d0] sm:$0xff]
    %v306 = vld [vmem:[#allocation5 + $0x2d8] sm:$0xff]
    %v307 = vld [vmem:[#allocation5 + $0x2e0] sm:$0xff]
    %v308 = vld [vmem:[#allocation5 + $0x2e8] sm:$0xff]
    %v309 = vld [vmem:[#allocation5 + $0x2f0] sm:$0xff]
    %v310 = vld [vmem:[#allocation5 + $0x2f8] sm:$0xff]
    %v311 = vld [vmem:[#allocation5 + $0x300] sm:$0xff]
    %v312 = vld [vmem:[#allocation5 + $0x308] sm:$0xff]
    %v313 = vld [vmem:[#allocation5 + $0x310] sm:$0xff]
    %v314 = vld [vmem:[#allocation5 + $0x318] sm:$0xff]
    %v315 = vld [vmem:[#allocation5 + $0x320] sm:$0xff]
    %v316 = vld [vmem:[#allocation5 + $0x328] sm:$0xff]
    %v317 = vld [vmem:[#allocation5 + $0x330] sm:$0xff]
    %v318 = vld [vmem:[#allocation5 + $0x338] sm:$0xff]
    %v319 = vld [vmem:[#allocation5 + $0x340] sm:$0xff]
    %v320 = vld [vmem:[#allocation5 + $0x348] sm:$0xff]
    %v321 = vld [vmem:[#allocation5 + $0x350] sm:$0xff]
    %v322 = vld [vmem:[#allocation5 + $0x358] sm:$0xff]
    %v323 = vld [vmem:[#allocation5 + $0x360] sm:$0xff]
    %v324 = vld [vmem:[#allocation5 + $0x368] sm:$0xff]
    %v325 = vld [vmem:[#allocation5 + $0x370] sm:$0xff]
    %v326 = vld [vmem:[#allocation5 + $0x378] sm:$0xff]
    %v327 = vld [vmem:[#allocation5 + $0x380] sm:$0xff]
    %v328 = vld [vmem:[#allocation5 + $0x388] sm:$0xff]
    %v329 = vld [vmem:[#allocation5 + $0x390] sm:$0xff]
    %v330 = vld [vmem:[#allocation5 + $0x398] sm:$0xff]
    %v331 = vld [vmem:[#allocation5 + $0x3a0] sm:$0xff]
    %v332 = vld [vmem:[#allocation5 + $0x3a8] sm:$0xff]
    %v333 = vld [vmem:[#allocation5 + $0x3b0] sm:$0xff]
    %v334 = vld [vmem:[#allocation5 + $0x3b8] sm:$0xff]
    %v335 = vld [vmem:[#allocation5 + $0x3c0] sm:$0xff]
    %v336 = vld [vmem:[#allocation5 + $0x3c8] sm:$0xff]
    %v337 = vld [vmem:[#allocation5 + $0x3d0] sm:$0xff]
    %v338 = vld [vmem:[#allocation5 + $0x3d8] sm:$0xff]
    %v339 = vld [vmem:[#allocation5 + $0x3e0] sm:$0xff]
    %v340 = vld [vmem:[#allocation5 + $0x3e8] sm:$0xff]
    %v341 = vld [vmem:[#allocation5 + $0x3f0] sm:$0xff]
    %v342 = vld [vmem:[#allocation5 + $0x3f8] sm:$0xff]
    %v343 = vld [vmem:[#allocation5 + $0x400] sm:$0xff]
    %v344 = vld [vmem:[#allocation5 + $0x408] sm:$0xff]
    %v345 = vld [vmem:[#allocation5 + $0x410] sm:$0xff]
    %v346 = vld [vmem:[#allocation5 + $0x418] sm:$0xff]
    %v347 = vld [vmem:[#allocation5 + $0x420] sm:$0xff]
    %v348 = vld [vmem:[#allocation5 + $0x428] sm:$0xff]
    %v349 = vld [vmem:[#allocation5 + $0x430] sm:$0xff]
    %v350 = vld [vmem:[#allocation5 + $0x438] sm:$0xff]
    %v351 = vld [vmem:[#allocation5 + $0x440] sm:$0xff]
    %v352 = vld [vmem:[#allocation5 + $0x448] sm:$0xff]
    %v353 = vld [vmem:[#allocation5 + $0x450] sm:$0xff]
    %v354 = vld [vmem:[#allocation5 + $0x458] sm:$0xff]
    %v355 = vld [vmem:[#allocation5 + $0x460] sm:$0xff]
    %v356 = vld [vmem:[#allocation5 + $0x468] sm:$0xff]
    %v357 = vld [vmem:[#allocation5 + $0x470] sm:$0xff]
    %v358 = vld [vmem:[#allocation5 + $0x478] sm:$0xff]
    %v359 = vld [vmem:[#allocation5 + $0x480] sm:$0xff]
    %v360 = vld [vmem:[#allocation5 + $0x488] sm:$0xff]
    %v361 = vld [vmem:[#allocation5 + $0x490] sm:$0xff]
    %v362 = vld [vmem:[#allocation5 + $0x498] sm:$0xff]
    %v363 = vld [vmem:[#allocation5 + $0x4a0] sm:$0xff]
    %v364 = vld [vmem:[#allocation5 + $0x4a8] sm:$0xff]
    %v365 = vld [vmem:[#allocation5 + $0x4b0] sm:$0xff]
    %v366 = vld [vmem:[#allocation5 + $0x4b8] sm:$0xff]
    %v367 = vld [vmem:[#allocation5 + $0x4c0] sm:$0xff]
    %v368 = vld [vmem:[#allocation5 + $0x4c8] sm:$0xff]
    %v369 = vld [vmem:[#allocation5 + $0x4d0] sm:$0xff]
    %v370 = vld [vmem:[#allocation5 + $0x4d8] sm:$0xff]
    %v371 = vld [vmem:[#allocation5 + $0x4e0] sm:$0xff]
    %v372 = vld [vmem:[#allocation5 + $0x4e8] sm:$0xff]
    %v373 = vld [vmem:[#allocation5 + $0x4f0] sm:$0xff]
    %v374 = vld [vmem:[#allocation5 + $0x4f8] sm:$0xff]
    %v375 = vld [vmem:[#allocation5 + $0x500] sm:$0xff]
    %v376 = vld [vmem:[#allocation5 + $0x508] sm:$0xff]
    %v377 = vld [vmem:[#allocation5 + $0x510] sm:$0xff]
    %v378 = vld [vmem:[#allocation5 + $0x518] sm:$0xff]
    %v379 = vld [vmem:[#allocation5 + $0x520] sm:$0xff]
    %v380 = vld [vmem:[#allocation5 + $0x528] sm:$0xff]
    %v381 = vld [vmem:[#allocation5 + $0x530] sm:$0xff]
    %v382 = vld [vmem:[#allocation5 + $0x538] sm:$0xff]
    %v383 = vld [vmem:[#allocation5 + $0x540] sm:$0xff]
    %v384 = vld [vmem:[#allocation5 + $0x548] sm:$0xff]
    %v385 = vld [vmem:[#allocation5 + $0x550] sm:$0xff]
    %v386 = vld [vmem:[#allocation5 + $0x558] sm:$0xff]
    %v387 = vld [vmem:[#allocation5 + $0x560] sm:$0xff]
    %v388 = vld [vmem:[#allocation5 + $0x568] sm:$0xff]
    %v389 = vld [vmem:[#allocation5 + $0x570] sm:$0xff]
    %v390 = vld [vmem:[#allocation5 + $0x578] sm:$0xff]
    %v391 = vld [vmem:[#allocation5 + $0x580] sm:$0xff]
    %v392 = vld [vmem:[#allocation5 + $0x588] sm:$0xff]
    %v393 = vld [vmem:[#allocation5 + $0x590] sm:$0xff]
    %v394 = vld [vmem:[#allocation5 + $0x598] sm:$0xff]
    %v395 = vld [vmem:[#allocation5 + $0x5a0] sm:$0xff]
    %v396 = vld [vmem:[#allocation5 + $0x5a8] sm:$0xff]
    %v397 = vld [vmem:[#allocation5 + $0x5b0] sm:$0xff]
    %v398 = vld [vmem:[#allocation5 + $0x5b8] sm:$0xff]
    %v399 = vld [vmem:[#allocation5 + $0x5c0] sm:$0xff]
    %v400 = vld [vmem:[#allocation5 + $0x5c8] sm:$0xff]
    %v401 = vld [vmem:[#allocation5 + $0x5d0] sm:$0xff]
    %v402 = vld [vmem:[#allocation5 + $0x5d8] sm:$0xff]
    %v403 = vld [vmem:[#allocation5 + $0x5e0] sm:$0xff]
    %v404 = vld [vmem:[#allocation5 + $0x5e8] sm:$0xff]
    %v405 = vld [vmem:[#allocation5 + $0x5f0] sm:$0xff]
    %v406 = vld [vmem:[#allocation5 + $0x5f8] sm:$0xff]
    %v407 = vld [vmem:[#allocation5 + $0x600] sm:$0xff]
    %v408 = vld [vmem:[#allocation5 + $0x608] sm:$0xff]
    %v409 = vld [vmem:[#allocation5 + $0x610] sm:$0xff]
    %v410 = vld [vmem:[#allocation5 + $0x618] sm:$0xff]
    %v411 = vld [vmem:[#allocation7] sm:$0xf]
    %v413 = vlaneseq
    %v414 = vshrl.u32 %v413, 7
    %v415 = vsub.s32 0, %v414
    %v416 = vrot.slane %v411, %v415
    %v417 = vlaneseq
    %v418 = vshrl.u32 %v417, 7
    %v419 = vsub.s32 1, %v418
    %v420 = vrot.slane %v411, %v419
    %v421 = vlaneseq
    %v422 = vshrl.u32 %v421, 7
    %v423 = vsub.s32 2, %v422
    %v424 = vrot.slane %v411, %v423
    %v425 = vlaneseq
    %v426 = vshrl.u32 %v425, 7
    %v427 = vsub.s32 3, %v426
    %v428 = vrot.slane %v411, %v427
    %v629 = vunpack.c.l.b16 %v215
    %v630 = vunpack.c.h.b16 %v215
    %v631 = vunpack.c.l.b16 %v216
    %v632 = vunpack.c.h.b16 %v216
    %v633 = vunpack.c.l.b16 %v217
    %v634 = vunpack.c.h.b16 %v217
    %v635 = vunpack.c.l.b16 %v218
    %v636 = vunpack.c.h.b16 %v218
    %v637 = vunpack.c.l.b16 %v219
    %v638 = vunpack.c.h.b16 %v219
    %v639 = vunpack.c.l.b16 %v220
    %v640 = vunpack.c.h.b16 %v220
    %v641 = vunpack.c.l.b16 %v221
    %v642 = vunpack.c.h.b16 %v221
    %v643 = vunpack.c.l.b16 %v222
    %v644 = vunpack.c.h.b16 %v222
    %v645 = vunpack.c.l.b16 %v223
    %v646 = vunpack.c.h.b16 %v223
    %v647 = vunpack.c.l.b16 %v224
    %v648 = vunpack.c.h.b16 %v224
    %v649 = vunpack.c.l.b16 %v225
    %v650 = vunpack.c.h.b16 %v225
    %v651 = vunpack.c.l.b16 %v226
    %v652 = vunpack.c.h.b16 %v226
    %v653 = vunpack.c.l.b16 %v227
    %v654 = vunpack.c.h.b16 %v227
    %v655 = vunpack.c.l.b16 %v228
    %v656 = vunpack.c.h.b16 %v228
    %v657 = vunpack.c.l.b16 %v229
    %v658 = vunpack.c.h.b16 %v229
    %v659 = vunpack.c.l.b16 %v230
    %v660 = vunpack.c.h.b16 %v230
    %v661 = vunpack.c.l.b16 %v231
    %v662 = vunpack.c.h.b16 %v231
    %v663 = vunpack.c.l.b16 %v232
    %v664 = vunpack.c.h.b16 %v232
    %v665 = vunpack.c.l.b16 %v233
    %v666 = vunpack.c.h.b16 %v233
    %v667 = vunpack.c.l.b16 %v234
    %v668 = vunpack.c.h.b16 %v234
    %v669 = vunpack.c.l.b16 %v235
    %v670 = vunpack.c.h.b16 %v235
    %v671 = vunpack.c.l.b16 %v236
    %v672 = vunpack.c.h.b16 %v236
    %v673 = vunpack.c.l.b16 %v237
    %v674 = vunpack.c.h.b16 %v237
    %v675 = vunpack.c.l.b16 %v238
    %v676 = vunpack.c.h.b16 %v238
    %v677 = vunpack.c.l.b16 %v239
    %v678 = vunpack.c.h.b16 %v239
    %v679 = vunpack.c.l.b16 %v240
    %v680 = vunpack.c.h.b16 %v240
    %v681 = vunpack.c.l.b16 %v241
    %v682 = vunpack.c.h.b16 %v241
    %v683 = vunpack.c.l.b16 %v242
    %v684 = vunpack.c.h.b16 %v242
    %v685 = vunpack.c.l.b16 %v243
    %v686 = vunpack.c.h.b16 %v243
    %v687 = vunpack.c.l.b16 %v244
    %v688 = vunpack.c.h.b16 %v244
    %v689 = vunpack.c.l.b16 %v245
    %v690 = vunpack.c.h.b16 %v245
    %v691 = vunpack.c.l.b16 %v246
    %v692 = vunpack.c.h.b16 %v246
    %v693 = vunpack.c.l.b16 %v247
    %v694 = vunpack.c.h.b16 %v247
    %v695 = vunpack.c.l.b16 %v248
    %v696 = vunpack.c.h.b16 %v248
    %v697 = vunpack.c.l.b16 %v249
    %v698 = vunpack.c.h.b16 %v249
    %v699 = vunpack.c.l.b16 %v250
    %v700 = vunpack.c.h.b16 %v250
    %v701 = vunpack.c.l.b16 %v251
    %v702 = vunpack.c.h.b16 %v251
    %v703 = vunpack.c.l.b16 %v252
    %v704 = vunpack.c.h.b16 %v252
    %v705 = vunpack.c.l.b16 %v253
    %v706 = vunpack.c.h.b16 %v253
    %v707 = vunpack.c.l.b16 %v254
    %v708 = vunpack.c.h.b16 %v254
    %v709 = vunpack.c.l.b16 %v255
    %v710 = vunpack.c.h.b16 %v255
    %v711 = vunpack.c.l.b16 %v256
    %v712 = vunpack.c.h.b16 %v256
    %v713 = vunpack.c.l.b16 %v257
    %v714 = vunpack.c.h.b16 %v257
    %v715 = vunpack.c.l.b16 %v258
    %v716 = vunpack.c.h.b16 %v258
    %v717 = vunpack.c.l.b16 %v259
    %v718 = vunpack.c.h.b16 %v259
    %v719 = vunpack.c.l.b16 %v260
    %v720 = vunpack.c.h.b16 %v260
    %v721 = vunpack.c.l.b16 %v261
    %v722 = vunpack.c.h.b16 %v261
    %v723 = vunpack.c.l.b16 %v262
    %v724 = vunpack.c.h.b16 %v262
    %v725 = vunpack.c.l.b16 %v263
    %v726 = vunpack.c.h.b16 %v263
    %v727 = vunpack.c.l.b16 %v264
    %v728 = vunpack.c.h.b16 %v264
    %v729 = vunpack.c.l.b16 %v265
    %v730 = vunpack.c.h.b16 %v265
    %v731 = vunpack.c.l.b16 %v266
    %v732 = vunpack.c.h.b16 %v266
    %v733 = vunpack.c.l.b16 %v267
    %v734 = vunpack.c.h.b16 %v267
    %v735 = vunpack.c.l.b16 %v268
    %v736 = vunpack.c.h.b16 %v268
    %v737 = vunpack.c.l.b16 %v269
    %v738 = vunpack.c.h.b16 %v269
    %v739 = vunpack.c.l.b16 %v270
    %v740 = vunpack.c.h.b16 %v270
    %v741 = vunpack.c.l.b16 %v271
    %v742 = vunpack.c.h.b16 %v271
    %v743 = vunpack.c.l.b16 %v272
    %v744 = vunpack.c.h.b16 %v272
    %v745 = vunpack.c.l.b16 %v273
    %v746 = vunpack.c.h.b16 %v273
    %v747 = vunpack.c.l.b16 %v274
    %v748 = vunpack.c.h.b16 %v274
    %v749 = vunpack.c.l.b16 %v275
    %v750 = vunpack.c.h.b16 %v275
    %v751 = vunpack.c.l.b16 %v276
    %v752 = vunpack.c.h.b16 %v276
    %v753 = vunpack.c.l.b16 %v277
    %v754 = vunpack.c.h.b16 %v277
    %v755 = vunpack.c.l.b16 %v278
    %v756 = vunpack.c.h.b16 %v278
    %v757 = vunpack.c.l.b16 %v279
    %v758 = vunpack.c.h.b16 %v279
    %v759 = vunpack.c.l.b16 %v280
    %v760 = vunpack.c.h.b16 %v280
    %v761 = vunpack.c.l.b16 %v281
    %v762 = vunpack.c.h.b16 %v281
    %v763 = vunpack.c.l.b16 %v282
    %v764 = vunpack.c.h.b16 %v282
    %v765 = vunpack.c.l.b16 %v283
    %v766 = vunpack.c.h.b16 %v283
    %v767 = vunpack.c.l.b16 %v284
    %v768 = vunpack.c.h.b16 %v284
    %v769 = vunpack.c.l.b16 %v285
    %v770 = vunpack.c.h.b16 %v285
    %v771 = vunpack.c.l.b16 %v286
    %v772 = vunpack.c.h.b16 %v286
    %v773 = vunpack.c.l.b16 %v287
    %v774 = vunpack.c.h.b16 %v287
    %v775 = vunpack.c.l.b16 %v288
    %v776 = vunpack.c.h.b16 %v288
    %v777 = vunpack.c.l.b16 %v289
    %v778 = vunpack.c.h.b16 %v289
    %v779 = vunpack.c.l.b16 %v290
    %v780 = vunpack.c.h.b16 %v290
    %v781 = vunpack.c.l.b16 %v291
    %v782 = vunpack.c.h.b16 %v291
    %v783 = vunpack.c.l.b16 %v292
    %v784 = vunpack.c.h.b16 %v292
    %v785 = vunpack.c.l.b16 %v293
    %v786 = vunpack.c.h.b16 %v293
    %v787 = vunpack.c.l.b16 %v294
    %v788 = vunpack.c.h.b16 %v294
    %v789 = vunpack.c.l.b16 %v295
    %v790 = vunpack.c.h.b16 %v295
    %v791 = vunpack.c.l.b16 %v296
    %v792 = vunpack.c.h.b16 %v296
    %v793 = vunpack.c.l.b16 %v297
    %v794 = vunpack.c.h.b16 %v297
    %v795 = vunpack.c.l.b16 %v298
    %v796 = vunpack.c.h.b16 %v298
    %v797 = vunpack.c.l.b16 %v299
    %v798 = vunpack.c.h.b16 %v299
    %v799 = vunpack.c.l.b16 %v300
    %v800 = vunpack.c.h.b16 %v300
    %v801 = vunpack.c.l.b16 %v301
    %v802 = vunpack.c.h.b16 %v301
    %v803 = vunpack.c.l.b16 %v302
    %v804 = vunpack.c.h.b16 %v302
    %v805 = vunpack.c.l.b16 %v303
    %v806 = vunpack.c.h.b16 %v303
    %v807 = vunpack.c.l.b16 %v304
    %v808 = vunpack.c.h.b16 %v304
    %v809 = vunpack.c.l.b16 %v305
    %v810 = vunpack.c.h.b16 %v305
    %v811 = vunpack.c.l.b16 %v306
    %v812 = vunpack.c.h.b16 %v306
    %v813 = vunpack.c.l.b16 %v307
    %v814 = vunpack.c.h.b16 %v307
    %v815 = vunpack.c.l.b16 %v308
    %v816 = vunpack.c.h.b16 %v308
    %v817 = vunpack.c.l.b16 %v309
    %v818 = vunpack.c.h.b16 %v309
    %v819 = vunpack.c.l.b16 %v310
    %v820 = vunpack.c.h.b16 %v310
    %v821 = vunpack.c.l.b16 %v311
    %v822 = vunpack.c.h.b16 %v311
    %v823 = vunpack.c.l.b16 %v312
    %v824 = vunpack.c.h.b16 %v312
    %v825 = vunpack.c.l.b16 %v313
    %v826 = vunpack.c.h.b16 %v313
    %v827 = vunpack.c.l.b16 %v314
    %v828 = vunpack.c.h.b16 %v314
    %v829 = vunpack.c.l.b16 %v315
    %v830 = vunpack.c.h.b16 %v315
    %v831 = vunpack.c.l.b16 %v316
    %v832 = vunpack.c.h.b16 %v316
    %v833 = vunpack.c.l.b16 %v317
    %v834 = vunpack.c.h.b16 %v317
    %v835 = vunpack.c.l.b16 %v318
    %v836 = vunpack.c.h.b16 %v318
    %v837 = vunpack.c.l.b16 %v319
    %v838 = vunpack.c.h.b16 %v319
    %v839 = vunpack.c.l.b16 %v320
    %v840 = vunpack.c.h.b16 %v320
    %v841 = vunpack.c.l.b16 %v321
    %v842 = vunpack.c.h.b16 %v321
    %v843 = vunpack.c.l.b16 %v322
    %v844 = vunpack.c.h.b16 %v322
    %v845 = vunpack.c.l.b16 %v323
    %v846 = vunpack.c.h.b16 %v323
    %v847 = vunpack.c.l.b16 %v324
    %v848 = vunpack.c.h.b16 %v324
    %v849 = vunpack.c.l.b16 %v325
    %v850 = vunpack.c.h.b16 %v325
    %v851 = vunpack.c.l.b16 %v326
    %v852 = vunpack.c.h.b16 %v326
    %v853 = vunpack.c.l.b16 %v327
    %v854 = vunpack.c.h.b16 %v327
    %v855 = vunpack.c.l.b16 %v328
    %v856 = vunpack.c.h.b16 %v328
    %v857 = vunpack.c.l.b16 %v329
    %v858 = vunpack.c.h.b16 %v329
    %v859 = vunpack.c.l.b16 %v330
    %v860 = vunpack.c.h.b16 %v330
    %v861 = vunpack.c.l.b16 %v331
    %v862 = vunpack.c.h.b16 %v331
    %v863 = vunpack.c.l.b16 %v332
    %v864 = vunpack.c.h.b16 %v332
    %v865 = vunpack.c.l.b16 %v333
    %v866 = vunpack.c.h.b16 %v333
    %v867 = vunpack.c.l.b16 %v334
    %v868 = vunpack.c.h.b16 %v334
    %v869 = vunpack.c.l.b16 %v335
    %v870 = vunpack.c.h.b16 %v335
    %v871 = vunpack.c.l.b16 %v336
    %v872 = vunpack.c.h.b16 %v336
    %v873 = vunpack.c.l.b16 %v337
    %v874 = vunpack.c.h.b16 %v337
    %v875 = vunpack.c.l.b16 %v338
    %v876 = vunpack.c.h.b16 %v338
    %v877 = vunpack.c.l.b16 %v339
    %v878 = vunpack.c.h.b16 %v339
    %v879 = vunpack.c.l.b16 %v340
    %v880 = vunpack.c.h.b16 %v340
    %v881 = vunpack.c.l.b16 %v341
    %v882 = vunpack.c.h.b16 %v341
    %v883 = vunpack.c.l.b16 %v342
    %v884 = vunpack.c.h.b16 %v342
    %v885 = vunpack.c.l.b16 %v343
    %v886 = vunpack.c.h.b16 %v343
    %v887 = vunpack.c.l.b16 %v344
    %v888 = vunpack.c.h.b16 %v344
    %v889 = vunpack.c.l.b16 %v345
    %v890 = vunpack.c.h.b16 %v345
    %v891 = vunpack.c.l.b16 %v346
    %v892 = vunpack.c.h.b16 %v346
    %v893 = vunpack.c.l.b16 %v347
    %v894 = vunpack.c.h.b16 %v347
    %v895 = vunpack.c.l.b16 %v348
    %v896 = vunpack.c.h.b16 %v348
    %v897 = vunpack.c.l.b16 %v349
    %v898 = vunpack.c.h.b16 %v349
    %v899 = vunpack.c.l.b16 %v350
    %v900 = vunpack.c.h.b16 %v350
    %v901 = vunpack.c.l.b16 %v351
    %v902 = vunpack.c.h.b16 %v351
    %v903 = vunpack.c.l.b16 %v352
    %v904 = vunpack.c.h.b16 %v352
    %v905 = vunpack.c.l.b16 %v353
    %v906 = vunpack.c.h.b16 %v353
    %v907 = vunpack.c.l.b16 %v354
    %v908 = vunpack.c.h.b16 %v354
    %v909 = vunpack.c.l.b16 %v355
    %v910 = vunpack.c.h.b16 %v355
    %v911 = vunpack.c.l.b16 %v356
    %v912 = vunpack.c.h.b16 %v356
    %v913 = vunpack.c.l.b16 %v357
    %v914 = vunpack.c.h.b16 %v357
    %v915 = vunpack.c.l.b16 %v358
    %v916 = vunpack.c.h.b16 %v358
    %v917 = vunpack.c.l.b16 %v359
    %v918 = vunpack.c.h.b16 %v359
    %v919 = vunpack.c.l.b16 %v360
    %v920 = vunpack.c.h.b16 %v360
    %v921 = vunpack.c.l.b16 %v361
    %v922 = vunpack.c.h.b16 %v361
    %v923 = vunpack.c.l.b16 %v362
    %v924 = vunpack.c.h.b16 %v362
    %v925 = vunpack.c.l.b16 %v363
    %v926 = vunpack.c.h.b16 %v363
    %v927 = vunpack.c.l.b16 %v364
    %v928 = vunpack.c.h.b16 %v364
    %v929 = vunpack.c.l.b16 %v365
    %v930 = vunpack.c.h.b16 %v365
    %v931 = vunpack.c.l.b16 %v366
    %v932 = vunpack.c.h.b16 %v366
    %v933 = vunpack.c.l.b16 %v367
    %v934 = vunpack.c.h.b16 %v367
    %v935 = vunpack.c.l.b16 %v368
    %v936 = vunpack.c.h.b16 %v368
    %v937 = vunpack.c.l.b16 %v369
    %v938 = vunpack.c.h.b16 %v369
    %v939 = vunpack.c.l.b16 %v370
    %v940 = vunpack.c.h.b16 %v370
    %v941 = vunpack.c.l.b16 %v371
    %v942 = vunpack.c.h.b16 %v371
    %v943 = vunpack.c.l.b16 %v372
    %v944 = vunpack.c.h.b16 %v372
    %v945 = vunpack.c.l.b16 %v373
    %v946 = vunpack.c.h.b16 %v373
    %v947 = vunpack.c.l.b16 %v374
    %v948 = vunpack.c.h.b16 %v374
    %v949 = vunpack.c.l.b16 %v375
    %v950 = vunpack.c.h.b16 %v375
    %v951 = vunpack.c.l.b16 %v376
    %v952 = vunpack.c.h.b16 %v376
    %v953 = vunpack.c.l.b16 %v377
    %v954 = vunpack.c.h.b16 %v377
    %v955 = vunpack.c.l.b16 %v378
    %v956 = vunpack.c.h.b16 %v378
    %v957 = vunpack.c.l.b16 %v379
    %v958 = vunpack.c.h.b16 %v379
    %v959 = vunpack.c.l.b16 %v380
    %v960 = vunpack.c.h.b16 %v380
    %v961 = vunpack.c.l.b16 %v381
    %v962 = vunpack.c.h.b16 %v381
    %v963 = vunpack.c.l.b16 %v382
    %v964 = vunpack.c.h.b16 %v382
    %v965 = vunpack.c.l.b16 %v383
    %v966 = vunpack.c.h.b16 %v383
    %v967 = vunpack.c.l.b16 %v384
    %v968 = vunpack.c.h.b16 %v384
    %v969 = vunpack.c.l.b16 %v385
    %v970 = vunpack.c.h.b16 %v385
    %v971 = vunpack.c.l.b16 %v386
    %v972 = vunpack.c.h.b16 %v386
    %v973 = vunpack.c.l.b16 %v387
    %v974 = vunpack.c.h.b16 %v387
    %v975 = vunpack.c.l.b16 %v388
    %v976 = vunpack.c.h.b16 %v388
    %v977 = vunpack.c.l.b16 %v389
    %v978 = vunpack.c.h.b16 %v389
    %v979 = vunpack.c.l.b16 %v390
    %v980 = vunpack.c.h.b16 %v390
    %v981 = vunpack.c.l.b16 %v391
    %v982 = vunpack.c.h.b16 %v391
    %v983 = vunpack.c.l.b16 %v392
    %v984 = vunpack.c.h.b16 %v392
    %v985 = vunpack.c.l.b16 %v393
    %v986 = vunpack.c.h.b16 %v393
    %v987 = vunpack.c.l.b16 %v394
    %v988 = vunpack.c.h.b16 %v394
    %v989 = vunpack.c.l.b16 %v395
    %v990 = vunpack.c.h.b16 %v395
    %v991 = vunpack.c.l.b16 %v396
    %v992 = vunpack.c.h.b16 %v396
    %v993 = vunpack.c.l.b16 %v397
    %v994 = vunpack.c.h.b16 %v397
    %v995 = vunpack.c.l.b16 %v398
    %v996 = vunpack.c.h.b16 %v398
    %v997 = vunpack.c.l.b16 %v399
    %v998 = vunpack.c.h.b16 %v399
    %v999 = vunpack.c.l.b16 %v400
    %v1000 = vunpack.c.h.b16 %v400
    %v1001 = vunpack.c.l.b16 %v401
    %v1002 = vunpack.c.h.b16 %v401
    %v1003 = vunpack.c.l.b16 %v402
    %v1004 = vunpack.c.h.b16 %v402
    %v1005 = vunpack.c.l.b16 %v403
    %v1006 = vunpack.c.h.b16 %v403
    %v1007 = vunpack.c.l.b16 %v404
    %v1008 = vunpack.c.h.b16 %v404
    %v1009 = vunpack.c.l.b16 %v405
    %v1010 = vunpack.c.h.b16 %v405
    %v1011 = vunpack.c.l.b16 %v406
    %v1012 = vunpack.c.h.b16 %v406
    %v1013 = vunpack.c.l.b16 %v407
    %v1014 = vunpack.c.h.b16 %v407
    %v1015 = vunpack.c.l.b16 %v408
    %v1016 = vunpack.c.h.b16 %v408
    %v1017 = vunpack.c.l.b16 %v409
    %v1018 = vunpack.c.h.b16 %v409
    %v1019 = vunpack.c.l.b16 %v410
    %v1020 = vunpack.c.h.b16 %v410
    %v1021 = vpack.c.b16 %v633, %v629
    %v1022 = vpack.c.b16 %v634, %v630
    %v1023 = vpack.c.b16 %v635, %v631
    %v1024 = vpack.c.b16 %v636, %v632
    %v1025 = vpack.c.b16 %v641, %v637
    %v1026 = vpack.c.b16 %v642, %v638
    %v1027 = vpack.c.b16 %v643, %v639
    %v1028 = vpack.c.b16 %v644, %v640
    %v1029 = vpack.c.b16 %v649, %v645
    %v1030 = vpack.c.b16 %v650, %v646
    %v1031 = vpack.c.b16 %v651, %v647
    %v1032 = vpack.c.b16 %v652, %v648
    %v1033 = vpack.c.b16 %v657, %v653
    %v1034 = vpack.c.b16 %v658, %v654
    %v1035 = vpack.c.b16 %v659, %v655
    %v1036 = vpack.c.b16 %v660, %v656
    %v1037 = vpack.c.b16 %v665, %v661
    %v1038 = vpack.c.b16 %v666, %v662
    %v1039 = vpack.c.b16 %v667, %v663
    %v1040 = vpack.c.b16 %v668, %v664
    %v1041 = vpack.c.b16 %v673, %v669
    %v1042 = vpack.c.b16 %v674, %v670
    %v1043 = vpack.c.b16 %v675, %v671
    %v1044 = vpack.c.b16 %v676, %v672
    %v1045 = vpack.c.b16 %v681, %v677
    %v1046 = vpack.c.b16 %v682, %v678
    %v1047 = vpack.c.b16 %v683, %v679
    %v1048 = vpack.c.b16 %v684, %v680
    %v1049 = vpack.c.b16 %v689, %v685
    %v1050 = vpack.c.b16 %v690, %v686
    %v1051 = vpack.c.b16 %v691, %v687
    %v1052 = vpack.c.b16 %v692, %v688
    %v1053 = vpack.c.b16 %v697, %v693
    %v1054 = vpack.c.b16 %v698, %v694
    %v1055 = vpack.c.b16 %v699, %v695
    %v1056 = vpack.c.b16 %v700, %v696
    %v1057 = vpack.c.b16 %v705, %v701
    %v1058 = vpack.c.b16 %v706, %v702
    %v1059 = vpack.c.b16 %v707, %v703
    %v1060 = vpack.c.b16 %v708, %v704
    %v1061 = vpack.c.b16 %v713, %v709
    %v1062 = vpack.c.b16 %v714, %v710
    %v1063 = vpack.c.b16 %v715, %v711
    %v1064 = vpack.c.b16 %v716, %v712
    %v1065 = vpack.c.b16 %v721, %v717
    %v1066 = vpack.c.b16 %v722, %v718
    %v1067 = vpack.c.b16 %v723, %v719
    %v1068 = vpack.c.b16 %v724, %v720
    %v1069 = vpack.c.b16 %v729, %v725
    %v1070 = vpack.c.b16 %v730, %v726
    %v1071 = vpack.c.b16 %v731, %v727
    %v1072 = vpack.c.b16 %v732, %v728
    %v1073 = vpack.c.b16 %v737, %v733
    %v1074 = vpack.c.b16 %v738, %v734
    %v1075 = vpack.c.b16 %v739, %v735
    %v1076 = vpack.c.b16 %v740, %v736
    %v1077 = vpack.c.b16 %v745, %v741
    %v1078 = vpack.c.b16 %v746, %v742
    %v1079 = vpack.c.b16 %v747, %v743
    %v1080 = vpack.c.b16 %v748, %v744
    %v1081 = vpack.c.b16 %v753, %v749
    %v1082 = vpack.c.b16 %v754, %v750
    %v1083 = vpack.c.b16 %v755, %v751
    %v1084 = vpack.c.b16 %v756, %v752
    %v1085 = vpack.c.b16 %v761, %v757
    %v1086 = vpack.c.b16 %v762, %v758
    %v1087 = vpack.c.b16 %v763, %v759
    %v1088 = vpack.c.b16 %v764, %v760
    %v1089 = vpack.c.b16 %v769, %v765
    %v1090 = vpack.c.b16 %v770, %v766
    %v1091 = vpack.c.b16 %v771, %v767
    %v1092 = vpack.c.b16 %v772, %v768
    %v1093 = vpack.c.b16 %v777, %v773
    %v1094 = vpack.c.b16 %v778, %v774
    %v1095 = vpack.c.b16 %v779, %v775
    %v1096 = vpack.c.b16 %v780, %v776
    %v1097 = vpack.c.b16 %v785, %v781
    %v1098 = vpack.c.b16 %v786, %v782
    %v1099 = vpack.c.b16 %v787, %v783
    %v1100 = vpack.c.b16 %v788, %v784
    %v1101 = vpack.c.b16 %v793, %v789
    %v1102 = vpack.c.b16 %v794, %v790
    %v1103 = vpack.c.b16 %v795, %v791
    %v1104 = vpack.c.b16 %v796, %v792
    %v1105 = vpack.c.b16 %v801, %v797
    %v1106 = vpack.c.b16 %v802, %v798
    %v1107 = vpack.c.b16 %v803, %v799
    %v1108 = vpack.c.b16 %v804, %v800
    %v1109 = vpack.c.b16 %v809, %v805
    %v1110 = vpack.c.b16 %v810, %v806
    %v1111 = vpack.c.b16 %v811, %v807
    %v1112 = vpack.c.b16 %v812, %v808
    %v1113 = vpack.c.b16 %v817, %v813
    %v1114 = vpack.c.b16 %v818, %v814
    %v1115 = vpack.c.b16 %v819, %v815
    %v1116 = vpack.c.b16 %v820, %v816
    %v1117 = vpack.c.b16 %v825, %v821
    %v1118 = vpack.c.b16 %v826, %v822
    %v1119 = vpack.c.b16 %v827, %v823
    %v1120 = vpack.c.b16 %v828, %v824
    %v1121 = vpack.c.b16 %v833, %v829
    %v1122 = vpack.c.b16 %v834, %v830
    %v1123 = vpack.c.b16 %v835, %v831
    %v1124 = vpack.c.b16 %v836, %v832
    %v1125 = vpack.c.b16 %v841, %v837
    %v1126 = vpack.c.b16 %v842, %v838
    %v1127 = vpack.c.b16 %v843, %v839
    %v1128 = vpack.c.b16 %v844, %v840
    %v1129 = vpack.c.b16 %v849, %v845
    %v1130 = vpack.c.b16 %v850, %v846
    %v1131 = vpack.c.b16 %v851, %v847
    %v1132 = vpack.c.b16 %v852, %v848
    %v1133 = vpack.c.b16 %v857, %v853
    %v1134 = vpack.c.b16 %v858, %v854
    %v1135 = vpack.c.b16 %v859, %v855
    %v1136 = vpack.c.b16 %v860, %v856
    %v1137 = vpack.c.b16 %v865, %v861
    %v1138 = vpack.c.b16 %v866, %v862
    %v1139 = vpack.c.b16 %v867, %v863
    %v1140 = vpack.c.b16 %v868, %v864
    %v1141 = vpack.c.b16 %v873, %v869
    %v1142 = vpack.c.b16 %v874, %v870
    %v1143 = vpack.c.b16 %v875, %v871
    %v1144 = vpack.c.b16 %v876, %v872
    %v1145 = vpack.c.b16 %v881, %v877
    %v1146 = vpack.c.b16 %v882, %v878
    %v1147 = vpack.c.b16 %v883, %v879
    %v1148 = vpack.c.b16 %v884, %v880
    %v1149 = vpack.c.b16 %v889, %v885
    %v1150 = vpack.c.b16 %v890, %v886
    %v1151 = vpack.c.b16 %v891, %v887
    %v1152 = vpack.c.b16 %v892, %v888
    %v1153 = vpack.c.b16 %v897, %v893
    %v1154 = vpack.c.b16 %v898, %v894
    %v1155 = vpack.c.b16 %v899, %v895
    %v1156 = vpack.c.b16 %v900, %v896
    %v1157 = vpack.c.b16 %v905, %v901
    %v1158 = vpack.c.b16 %v906, %v902
    %v1159 = vpack.c.b16 %v907, %v903
    %v1160 = vpack.c.b16 %v908, %v904
    %v1161 = vpack.c.b16 %v913, %v909
    %v1162 = vpack.c.b16 %v914, %v910
    %v1163 = vpack.c.b16 %v915, %v911
    %v1164 = vpack.c.b16 %v916, %v912
    %v1165 = vpack.c.b16 %v921, %v917
    %v1166 = vpack.c.b16 %v922, %v918
    %v1167 = vpack.c.b16 %v923, %v919
    %v1168 = vpack.c.b16 %v924, %v920
    %v1169 = vpack.c.b16 %v929, %v925
    %v1170 = vpack.c.b16 %v930, %v926
    %v1171 = vpack.c.b16 %v931, %v927
    %v1172 = vpack.c.b16 %v932, %v928
    %v1173 = vpack.c.b16 %v937, %v933
    %v1174 = vpack.c.b16 %v938, %v934
    %v1175 = vpack.c.b16 %v939, %v935
    %v1176 = vpack.c.b16 %v940, %v936
    %v1177 = vpack.c.b16 %v945, %v941
    %v1178 = vpack.c.b16 %v946, %v942
    %v1179 = vpack.c.b16 %v947, %v943
    %v1180 = vpack.c.b16 %v948, %v944
    %v1181 = vpack.c.b16 %v953, %v949
    %v1182 = vpack.c.b16 %v954, %v950
    %v1183 = vpack.c.b16 %v955, %v951
    %v1184 = vpack.c.b16 %v956, %v952
    %v1185 = vpack.c.b16 %v961, %v957
    %v1186 = vpack.c.b16 %v962, %v958
    %v1187 = vpack.c.b16 %v963, %v959
    %v1188 = vpack.c.b16 %v964, %v960
    %v1189 = vpack.c.b16 %v969, %v965
    %v1190 = vpack.c.b16 %v970, %v966
    %v1191 = vpack.c.b16 %v971, %v967
    %v1192 = vpack.c.b16 %v972, %v968
    %v1193 = vpack.c.b16 %v977, %v973
    %v1194 = vpack.c.b16 %v978, %v974
    %v1195 = vpack.c.b16 %v979, %v975
    %v1196 = vpack.c.b16 %v980, %v976
    %v1197 = vpack.c.b16 %v985, %v981
    %v1198 = vpack.c.b16 %v986, %v982
    %v1199 = vpack.c.b16 %v987, %v983
    %v1200 = vpack.c.b16 %v988, %v984
    %v1201 = vpack.c.b16 %v993, %v989
    %v1202 = vpack.c.b16 %v994, %v990
    %v1203 = vpack.c.b16 %v995, %v991
    %v1204 = vpack.c.b16 %v996, %v992
    %v1205 = vpack.c.b16 %v1001, %v997
    %v1206 = vpack.c.b16 %v1002, %v998
    %v1207 = vpack.c.b16 %v1003, %v999
    %v1208 = vpack.c.b16 %v1004, %v1000
    %v1209 = vpack.c.b16 %v1009, %v1005
    %v1210 = vpack.c.b16 %v1010, %v1006
    %v1211 = vpack.c.b16 %v1011, %v1007
    %v1212 = vpack.c.b16 %v1012, %v1008
    %v1213 = vpack.c.b16 %v1017, %v1013
    %v1214 = vpack.c.b16 %v1018, %v1014
    %v1215 = vpack.c.b16 %v1019, %v1015
    %v1216 = vpack.c.b16 %v1020, %v1016
    %vm1413 = vcmask 130048
    %v1415 = vsel %vm1413, %v214, 0
    %1417 = vmatprep.subr.bf16.mxu0 %v1050
    %1418 = vmatpush1.bf16.msra.mxu0 %v1049
    %1419 = vmatprep.subr.bf16.mxu0 %v1046
    %1420 = vmatpush1.bf16.msra.mxu0 %v1045
    %1421 = vmatprep.subr.bf16.mxu0 %v1042
    %1422 = vmatpush1.bf16.msra.mxu0 %v1041
    %1423 = vmatprep.subr.bf16.mxu0 %v1038
    %1424 = vmatpush1.bf16.msra.mxu0 %v1037
    %1425 = vmatprep.subr.bf16.mxu0 %v1034
    %1426 = vmatpush1.bf16.msra.mxu0 %v1033
    %1427 = vmatprep.subr.bf16.mxu0 %v1030
    %1428 = vmatpush1.bf16.msra.mxu0 %v1029
    %1429 = vmatprep.subr.bf16.mxu0 %v1026
    %1430 = vmatpush1.bf16.msra.mxu0 %v1025
    %1431 = vmatprep.subr.bf16.mxu0 %v1022
    %1432 = vmatpush1.bf16.msra.mxu0 %v1021
    %1433 = vmatprep.subr.bf16.mxu0 %v1082
    %1434 = vmatpush2.bf16.msra.mxu0 %v1081
    %1435 = vmatprep.subr.bf16.mxu0 %v1078
    %1436 = vmatpush2.bf16.msra.mxu0 %v1077
    %1437 = vmatprep.subr.bf16.mxu0 %v1074
    %1438 = vmatpush2.bf16.msra.mxu0 %v1073
    %1439 = vmatprep.subr.bf16.mxu0 %v1070
    %1440 = vmatpush2.bf16.msra.mxu0 %v1069
    %1441 = vmatprep.subr.bf16.mxu0 %v1066
    %1442 = vmatpush2.bf16.msra.mxu0 %v1065
    %1443 = vmatprep.subr.bf16.mxu0 %v1062
    %1444 = vmatpush2.bf16.msra.mxu0 %v1061
    %1445 = vmatprep.subr.bf16.mxu0 %v1058
    %1446 = vmatpush2.bf16.msra.mxu0 %v1057
    %1447 = vmatprep.subr.bf16.mxu0 %v1054
    %1448 = vmatpush2.bf16.msra.mxu0 %v1053
    %1449 = vmatprep.mubr.bf16.mxu0 %v209
    %1450 = vmatmul.mubr.bf16.gmra.mxu0 %v208
    %v1451 = vpop.f32.mrf.mxu0
    %v1452 = vadd.f32 %v416, %v1451
    %v1453 = vpop.f32.mrf.mxu0
    %v1454 = vadd.f32 %v420, %v1453
    %v1455 = vpop.f32.mrf.mxu0
    %v1456 = vpop.f32.mrf.mxu0
    %1457 = vdwg.mxu0
    %1458 = vmatprep.subr.bf16.mxu0 %v1114
    %1459 = vmatpush1.bf16.msra.mxu0 %v1113
    %1460 = vmatprep.subr.bf16.mxu0 %v1110
    %1461 = vmatpush1.bf16.msra.mxu0 %v1109
    %1462 = vmatprep.subr.bf16.mxu0 %v1106
    %1463 = vmatpush1.bf16.msra.mxu0 %v1105
    %1464 = vmatprep.subr.bf16.mxu0 %v1102
    %1465 = vmatpush1.bf16.msra.mxu0 %v1101
    %1466 = vmatprep.subr.bf16.mxu0 %v1098
    %1467 = vmatpush1.bf16.msra.mxu0 %v1097
    %1468 = vmatprep.subr.bf16.mxu0 %v1094
    %1469 = vmatpush1.bf16.msra.mxu0 %v1093
    %1470 = vmatprep.subr.bf16.mxu0 %v1090
    %1471 = vmatpush1.bf16.msra.mxu0 %v1089
    %1472 = vmatprep.subr.bf16.mxu0 %v1086
    %1473 = vmatpush1.bf16.msra.mxu0 %v1085
    %1474 = vmatprep.subr.bf16.mxu0 %v1146
    %1475 = vmatpush2.bf16.msra.mxu0 %v1145
    %1476 = vmatprep.subr.bf16.mxu0 %v1142
    %1477 = vmatpush2.bf16.msra.mxu0 %v1141
    %1478 = vmatprep.subr.bf16.mxu0 %v1138
    %1479 = vmatpush2.bf16.msra.mxu0 %v1137
    %1480 = vmatprep.subr.bf16.mxu0 %v1134
    %1481 = vmatpush2.bf16.msra.mxu0 %v1133
    %1482 = vmatprep.subr.bf16.mxu0 %v1130
    %1483 = vmatpush2.bf16.msra.mxu0 %v1129
    %1484 = vmatprep.subr.bf16.mxu0 %v1126
    %1485 = vmatpush2.bf16.msra.mxu0 %v1125
    %1486 = vmatprep.subr.bf16.mxu0 %v1122
    %1487 = vmatpush2.bf16.msra.mxu0 %v1121
    %1488 = vmatprep.subr.bf16.mxu0 %v1118
    %1489 = vmatpush2.bf16.msra.mxu0 %v1117
    %1490 = vmatprep.mubr.bf16.mxu0 %v211
    %1491 = vmatmul.mubr.bf16.gmra.mxu0 %v210
    %v1492 = vpop.f32.mrf.mxu0
    %v1493 = vadd.f32 %v1452, %v1492
    %v1494 = vpop.f32.mrf.mxu0
    %v1495 = vadd.f32 %v1454, %v1494
    %v1496 = vpop.f32.mrf.mxu0
    %v1497 = vpop.f32.mrf.mxu0
    %1498 = vdwg.mxu0
    %1499 = vmatprep.subr.bf16.mxu0 %v1178
    %1500 = vmatpush1.bf16.msra.mxu0 %v1177
    %1501 = vmatprep.subr.bf16.mxu0 %v1174
    %1502 = vmatpush1.bf16.msra.mxu0 %v1173
    %1503 = vmatprep.subr.bf16.mxu0 %v1170
    %1504 = vmatpush1.bf16.msra.mxu0 %v1169
    %1505 = vmatprep.subr.bf16.mxu0 %v1166
    %1506 = vmatpush1.bf16.msra.mxu0 %v1165
    %1507 = vmatprep.subr.bf16.mxu0 %v1162
    %1508 = vmatpush1.bf16.msra.mxu0 %v1161
    %1509 = vmatprep.subr.bf16.mxu0 %v1158
    %1510 = vmatpush1.bf16.msra.mxu0 %v1157
    %1511 = vmatprep.subr.bf16.mxu0 %v1154
    %1512 = vmatpush1.bf16.msra.mxu0 %v1153
    %1513 = vmatprep.subr.bf16.mxu0 %v1150
    %1514 = vmatpush1.bf16.msra.mxu0 %v1149
    %1515 = vmatprep.subr.bf16.mxu0 %v1210
    %1516 = vmatpush2.bf16.msra.mxu0 %v1209
    %1517 = vmatprep.subr.bf16.mxu0 %v1206
    %1518 = vmatpush2.bf16.msra.mxu0 %v1205
    %1519 = vmatprep.subr.bf16.mxu0 %v1202
    %1520 = vmatpush2.bf16.msra.mxu0 %v1201
    %1521 = vmatprep.subr.bf16.mxu0 %v1198
    %1522 = vmatpush2.bf16.msra.mxu0 %v1197
    %1523 = vmatprep.subr.bf16.mxu0 %v1194
    %1524 = vmatpush2.bf16.msra.mxu0 %v1193
    %1525 = vmatprep.subr.bf16.mxu0 %v1190
    %1526 = vmatpush2.bf16.msra.mxu0 %v1189
    %1527 = vmatprep.subr.bf16.mxu0 %v1186
    %1528 = vmatpush2.bf16.msra.mxu0 %v1185
    %1529 = vmatprep.subr.bf16.mxu0 %v1182
    %1530 = vmatpush2.bf16.msra.mxu0 %v1181
    %1531 = vmatprep.mubr.bf16.mxu0 %v213
    %1532 = vmatmul.mubr.bf16.gmra.mxu0 %v212
    %v1533 = vpop.f32.mrf.mxu0
    %v1534 = vadd.f32 %v1493, %v1533
    %v1535 = vpop.f32.mrf.mxu0
    %v1536 = vadd.f32 %v1495, %v1535
    %v1537 = vpop.f32.mrf.mxu0
    %v1538 = vpop.f32.mrf.mxu0
    %1539 = vdwg.mxu0
    %1540 = vmatprep.subr.bf16.mxu0 0
    %1541 = vmatpush1.bf16.msra.mxu0 0
    %1542 = vmatprep.subr.bf16.mxu0 0
    %1543 = vmatpush1.bf16.msra.mxu0 0
    %1544 = vmatprep.subr.bf16.mxu0 0
    %1545 = vmatpush1.bf16.msra.mxu0 0
    %1546 = vmatprep.subr.bf16.mxu0 0
    %1547 = vmatpush1.bf16.msra.mxu0 0
    %1548 = vmatprep.subr.bf16.mxu0 0
    %1549 = vmatpush1.bf16.msra.mxu0 0
    %1550 = vmatprep.subr.bf16.mxu0 0
    %1551 = vmatpush1.bf16.msra.mxu0 0
    %1552 = vmatprep.subr.bf16.mxu0 0
    %1553 = vmatpush1.bf16.msra.mxu0 0
    %1554 = vmatprep.subr.bf16.mxu0 %v1214
    %1555 = vmatpush1.bf16.msra.mxu0 %v1213
    %1556 = vmatprep.subr.bf16.mxu0 0
    %1557 = vmatpush2.bf16.msra.mxu0 0
    %1558 = vmatprep.subr.bf16.mxu0 0
    %1559 = vmatpush2.bf16.msra.mxu0 0
    %1560 = vmatprep.subr.bf16.mxu0 0
    %1561 = vmatpush2.bf16.msra.mxu0 0
    %1562 = vmatprep.subr.bf16.mxu0 0
    %1563 = vmatpush2.bf16.msra.mxu0 0
    %1564 = vmatprep.subr.bf16.mxu0 0
    %1565 = vmatpush2.bf16.msra.mxu0 0
    %1566 = vmatprep.subr.bf16.mxu0 0
    %1567 = vmatpush2.bf16.msra.mxu0 0
    %1568 = vmatprep.subr.bf16.mxu0 0
    %1569 = vmatpush2.bf16.msra.mxu0 0
    %1570 = vmatprep.subr.bf16.mxu0 0
    %1571 = vmatpush2.bf16.msra.mxu0 0
    %1572 = vmatprep.mubr.bf16.mxu0 0
    %1573 = vmatmul.mubr.bf16.gmra.mxu0 %v1415
    %v1574 = vpop.f32.mrf.mxu0
    %v1575 = vadd.f32 %v1534, %v1574
    %v1576 = vpop.f32.mrf.mxu0
    %v1577 = vadd.f32 %v1536, %v1576
    %v1578 = vpop.f32.mrf.mxu0
    %v1579 = vpop.f32.mrf.mxu0
    %1580 = vdwg.mxu0
    %1581 = vmatprep.subr.bf16.mxu0 %v1052
    %1582 = vmatpush1.bf16.msra.mxu0 %v1051
    %1583 = vmatprep.subr.bf16.mxu0 %v1048
    %1584 = vmatpush1.bf16.msra.mxu0 %v1047
    %1585 = vmatprep.subr.bf16.mxu0 %v1044
    %1586 = vmatpush1.bf16.msra.mxu0 %v1043
    %1587 = vmatprep.subr.bf16.mxu0 %v1040
    %1588 = vmatpush1.bf16.msra.mxu0 %v1039
    %1589 = vmatprep.subr.bf16.mxu0 %v1036
    %1590 = vmatpush1.bf16.msra.mxu0 %v1035
    %1591 = vmatprep.subr.bf16.mxu0 %v1032
    %1592 = vmatpush1.bf16.msra.mxu0 %v1031
    %1593 = vmatprep.subr.bf16.mxu0 %v1028
    %1594 = vmatpush1.bf16.msra.mxu0 %v1027
    %1595 = vmatprep.subr.bf16.mxu0 %v1024
    %1596 = vmatpush1.bf16.msra.mxu0 %v1023
    %1597 = vmatprep.subr.bf16.mxu0 %v1084
    %1598 = vmatpush2.bf16.msra.mxu0 %v1083
    %1599 = vmatprep.subr.bf16.mxu0 %v1080
    %1600 = vmatpush2.bf16.msra.mxu0 %v1079
    %1601 = vmatprep.subr.bf16.mxu0 %v1076
    %1602 = vmatpush2.bf16.msra.mxu0 %v1075
    %1603 = vmatprep.subr.bf16.mxu0 %v1072
    %1604 = vmatpush2.bf16.msra.mxu0 %v1071
    %1605 = vmatprep.subr.bf16.mxu0 %v1068
    %1606 = vmatpush2.bf16.msra.mxu0 %v1067
    %1607 = vmatprep.subr.bf16.mxu0 %v1064
    %1608 = vmatpush2.bf16.msra.mxu0 %v1063
    %1609 = vmatprep.subr.bf16.mxu0 %v1060
    %1610 = vmatpush2.bf16.msra.mxu0 %v1059
    %1611 = vmatprep.subr.bf16.mxu0 %v1056
    %1612 = vmatpush2.bf16.msra.mxu0 %v1055
    %1613 = vmatprep.mubr.bf16.mxu0 %v209
    %1614 = vmatmul.mubr.bf16.gmra.mxu0 %v208
    %v1615 = vpop.f32.mrf.mxu0
    %v1616 = vadd.f32 %v424, %v1615
    %v1617 = vpop.f32.mrf.mxu0
    %v1618 = vadd.f32 %v428, %v1617
    %v1619 = vpop.f32.mrf.mxu0
    %v1620 = vpop.f32.mrf.mxu0
    %1621 = vdwg.mxu0
    %1622 = vmatprep.subr.bf16.mxu0 %v1116
    %1623 = vmatpush1.bf16.msra.mxu0 %v1115
    %1624 = vmatprep.subr.bf16.mxu0 %v1112
    %1625 = vmatpush1.bf16.msra.mxu0 %v1111
    %1626 = vmatprep.subr.bf16.mxu0 %v1108
    %1627 = vmatpush1.bf16.msra.mxu0 %v1107
    %1628 = vmatprep.subr.bf16.mxu0 %v1104
    %1629 = vmatpush1.bf16.msra.mxu0 %v1103
    %1630 = vmatprep.subr.bf16.mxu0 %v1100
    %1631 = vmatpush1.bf16.msra.mxu0 %v1099
    %1632 = vmatprep.subr.bf16.mxu0 %v1096
    %1633 = vmatpush1.bf16.msra.mxu0 %v1095
    %1634 = vmatprep.subr.bf16.mxu0 %v1092
    %1635 = vmatpush1.bf16.msra.mxu0 %v1091
    %1636 = vmatprep.subr.bf16.mxu0 %v1088
    %1637 = vmatpush1.bf16.msra.mxu0 %v1087
    %1638 = vmatprep.subr.bf16.mxu0 %v1148
    %1639 = vmatpush2.bf16.msra.mxu0 %v1147
    %1640 = vmatprep.subr.bf16.mxu0 %v1144
    %1641 = vmatpush2.bf16.msra.mxu0 %v1143
    %1642 = vmatprep.subr.bf16.mxu0 %v1140
    %1643 = vmatpush2.bf16.msra.mxu0 %v1139
    %1644 = vmatprep.subr.bf16.mxu0 %v1136
    %1645 = vmatpush2.bf16.msra.mxu0 %v1135
    %1646 = vmatprep.subr.bf16.mxu0 %v1132
    %1647 = vmatpush2.bf16.msra.mxu0 %v1131
    %1648 = vmatprep.subr.bf16.mxu0 %v1128
    %1649 = vmatpush2.bf16.msra.mxu0 %v1127
    %1650 = vmatprep.subr.bf16.mxu0 %v1124
    %1651 = vmatpush2.bf16.msra.mxu0 %v1123
    %1652 = vmatprep.subr.bf16.mxu0 %v1120
    %1653 = vmatpush2.bf16.msra.mxu0 %v1119
    %1654 = vmatprep.mubr.bf16.mxu0 %v211
    %1655 = vmatmul.mubr.bf16.gmra.mxu0 %v210
    %v1656 = vpop.f32.mrf.mxu0
    %v1657 = vadd.f32 %v1616, %v1656
    %v1658 = vpop.f32.mrf.mxu0
    %v1659 = vadd.f32 %v1618, %v1658
    %v1660 = vpop.f32.mrf.mxu0
    %v1661 = vpop.f32.mrf.mxu0
    %1662 = vdwg.mxu0
    %1663 = vmatprep.subr.bf16.mxu0 %v1180
    %1664 = vmatpush1.bf16.msra.mxu0 %v1179
    %1665 = vmatprep.subr.bf16.mxu0 %v1176
    %1666 = vmatpush1.bf16.msra.mxu0 %v1175
    %1667 = vmatprep.subr.bf16.mxu0 %v1172
    %1668 = vmatpush1.bf16.msra.mxu0 %v1171
    %1669 = vmatprep.subr.bf16.mxu0 %v1168
    %1670 = vmatpush1.bf16.msra.mxu0 %v1167
    %1671 = vmatprep.subr.bf16.mxu0 %v1164
    %1672 = vmatpush1.bf16.msra.mxu0 %v1163
    %1673 = vmatprep.subr.bf16.mxu0 %v1160
    %1674 = vmatpush1.bf16.msra.mxu0 %v1159
    %1675 = vmatprep.subr.bf16.mxu0 %v1156
    %1676 = vmatpush1.bf16.msra.mxu0 %v1155
    %1677 = vmatprep.subr.bf16.mxu0 %v1152
    %1678 = vmatpush1.bf16.msra.mxu0 %v1151
    %1679 = vmatprep.subr.bf16.mxu0 %v1212
    %1680 = vmatpush2.bf16.msra.mxu0 %v1211
    %1681 = vmatprep.subr.bf16.mxu0 %v1208
    %1682 = vmatpush2.bf16.msra.mxu0 %v1207
    %1683 = vmatprep.subr.bf16.mxu0 %v1204
    %1684 = vmatpush2.bf16.msra.mxu0 %v1203
    %1685 = vmatprep.subr.bf16.mxu0 %v1200
    %1686 = vmatpush2.bf16.msra.mxu0 %v1199
    %1687 = vmatprep.subr.bf16.mxu0 %v1196
    %1688 = vmatpush2.bf16.msra.mxu0 %v1195
    %1689 = vmatprep.subr.bf16.mxu0 %v1192
    %1690 = vmatpush2.bf16.msra.mxu0 %v1191
    %1691 = vmatprep.subr.bf16.mxu0 %v1188
    %1692 = vmatpush2.bf16.msra.mxu0 %v1187
    %1693 = vmatprep.subr.bf16.mxu0 %v1184
    %1694 = vmatpush2.bf16.msra.mxu0 %v1183
    %1695 = vmatprep.mubr.bf16.mxu0 %v213
    %1696 = vmatmul.mubr.bf16.gmra.mxu0 %v212
    %v1697 = vpop.f32.mrf.mxu0
    %v1698 = vadd.f32 %v1657, %v1697
    %v1699 = vpop.f32.mrf.mxu0
    %v1700 = vadd.f32 %v1659, %v1699
    %v1701 = vpop.f32.mrf.mxu0
    %v1702 = vpop.f32.mrf.mxu0
    %1703 = vdwg.mxu0
    %1704 = vmatprep.subr.bf16.mxu0 0
    %1705 = vmatpush1.bf16.msra.mxu0 0
    %1706 = vmatprep.subr.bf16.mxu0 0
    %1707 = vmatpush1.bf16.msra.mxu0 0
    %1708 = vmatprep.subr.bf16.mxu0 0
    %1709 = vmatpush1.bf16.msra.mxu0 0
    %1710 = vmatprep.subr.bf16.mxu0 0
    %1711 = vmatpush1.bf16.msra.mxu0 0
    %1712 = vmatprep.subr.bf16.mxu0 0
    %1713 = vmatpush1.bf16.msra.mxu0 0
    %1714 = vmatprep.subr.bf16.mxu0 0
    %1715 = vmatpush1.bf16.msra.mxu0 0
    %1716 = vmatprep.subr.bf16.mxu0 0
    %1717 = vmatpush1.bf16.msra.mxu0 0
    %1718 = vmatprep.subr.bf16.mxu0 %v1216
    %1719 = vmatpush1.bf16.msra.mxu0 %v1215
    %1720 = vmatprep.subr.bf16.mxu0 0
    %1721 = vmatpush2.bf16.msra.mxu0 0
    %1722 = vmatprep.subr.bf16.mxu0 0
    %1723 = vmatpush2.bf16.msra.mxu0 0
    %1724 = vmatprep.subr.bf16.mxu0 0
    %1725 = vmatpush2.bf16.msra.mxu0 0
    %1726 = vmatprep.subr.bf16.mxu0 0
    %1727 = vmatpush2.bf16.msra.mxu0 0
    %1728 = vmatprep.subr.bf16.mxu0 0
    %1729 = vmatpush2.bf16.msra.mxu0 0
    %1730 = vmatprep.subr.bf16.mxu0 0
    %1731 = vmatpush2.bf16.msra.mxu0 0
    %1732 = vmatprep.subr.bf16.mxu0 0
    %1733 = vmatpush2.bf16.msra.mxu0 0
    %1734 = vmatprep.subr.bf16.mxu0 0
    %1735 = vmatpush2.bf16.msra.mxu0 0
    %1736 = vmatprep.mubr.bf16.mxu0 0
    %1737 = vmatmul.mubr.bf16.gmra.mxu0 %v1415
    %v1738 = vpop.f32.mrf.mxu0
    %v1739 = vadd.f32 %v1698, %v1738
    %v1740 = vpop.f32.mrf.mxu0
    %v1741 = vadd.f32 %v1700, %v1740
    %v1742 = vpop.f32.mrf.mxu0
    %v1743 = vpop.f32.mrf.mxu0
    %1744 = vdwg.mxu0
    %v1745 = vmax.f32 %v1575, 0.0
    %v1746 = vmax.f32 %v1577, 0.0
    %v1747 = vmax.f32 %v1739, 0.0
    %v1748 = vmax.f32 %v1741, 0.0
    %v1749 = vpack.c.bf16 %v1745, %v1745
    %v1750 = vpack.c.bf16 %v1746, %v1746
    %v1751 = vpack.c.bf16 %v1747, %v1747
    %v1752 = vpack.c.bf16 %v1748, %v1748
    %v1753 = vld [vmem:[#allocation8] sm:$0xff]
    %v1754 = vld [vmem:[#allocation8 + $0x8] sm:$0xff]
    %v1755 = vld [vmem:[#allocation8 + $0x10] sm:$0xff]
    %v1756 = vld [vmem:[#allocation8 + $0x18] sm:$0xff]
    %v1757 = vld [vmem:[#allocation8 + $0x20] sm:$0xff]
    %v1758 = vld [vmem:[#allocation8 + $0x28] sm:$0xff]
    %v1759 = vld [vmem:[#allocation8 + $0x30] sm:$0xff]
    %v1760 = vld [vmem:[#allocation8 + $0x38] sm:$0xff]
    %v1761 = vld [vmem:[#allocation8 + $0x40] sm:$0xff]
    %v1762 = vld [vmem:[#allocation8 + $0x48] sm:$0xff]
    %v1763 = vld [vmem:[#allocation8 + $0x50] sm:$0xff]
    %v1764 = vld [vmem:[#allocation8 + $0x58] sm:$0xff]
    %v1765 = vld [vmem:[#allocation8 + $0x60] sm:$0xff]
    %v1766 = vld [vmem:[#allocation8 + $0x68] sm:$0xff]
    %v1767 = vld [vmem:[#allocation8 + $0x70] sm:$0xff]
    %v1768 = vld [vmem:[#allocation8 + $0x78] sm:$0xff]
    %v1769 = vld [vmem:[#allocation8 + $0x80] sm:$0xff]
    %v1770 = vld [vmem:[#allocation8 + $0x88] sm:$0xff]
    %v1771 = vld [vmem:[#allocation8 + $0x90] sm:$0xff]
    %v1772 = vld [vmem:[#allocation8 + $0x98] sm:$0xff]
    %v1773 = vld [vmem:[#allocation8 + $0xa0] sm:$0xff]
    %v1774 = vld [vmem:[#allocation8 + $0xa8] sm:$0xff]
    %v1775 = vld [vmem:[#allocation8 + $0xb0] sm:$0xff]
    %v1776 = vld [vmem:[#allocation8 + $0xb8] sm:$0xff]
    %v1777 = vld [vmem:[#allocation8 + $0xc0] sm:$0xff]
    %v1778 = vld [vmem:[#allocation8 + $0xc8] sm:$0xff]
    %v1779 = vld [vmem:[#allocation8 + $0xd0] sm:$0xff]
    %v1780 = vld [vmem:[#allocation8 + $0xd8] sm:$0xff]
    %v1781 = vld [vmem:[#allocation8 + $0xe0] sm:$0xff]
    %v1782 = vld [vmem:[#allocation8 + $0xe8] sm:$0xff]
    %v1783 = vld [vmem:[#allocation8 + $0xf0] sm:$0xff]
    %v1784 = vld [vmem:[#allocation8 + $0xf8] sm:$0xff]
    %v1785 = vld [vmem:[#allocation8 + $0x100] sm:$0xff]
    %v1786 = vld [vmem:[#allocation8 + $0x108] sm:$0xff]
    %v1787 = vld [vmem:[#allocation8 + $0x110] sm:$0xff]
    %v1788 = vld [vmem:[#allocation8 + $0x118] sm:$0xff]
    %v1789 = vld [vmem:[#allocation8 + $0x120] sm:$0xff]
    %v1790 = vld [vmem:[#allocation8 + $0x128] sm:$0xff]
    %v1791 = vld [vmem:[#allocation8 + $0x130] sm:$0xff]
    %v1792 = vld [vmem:[#allocation8 + $0x138] sm:$0xff]
    %v1793 = vld [vmem:[#allocation8 + $0x140] sm:$0xff]
    %v1794 = vld [vmem:[#allocation8 + $0x148] sm:$0xff]
    %v1795 = vld [vmem:[#allocation8 + $0x150] sm:$0xff]
    %v1796 = vld [vmem:[#allocation8 + $0x158] sm:$0xff]
    %v1797 = vld [vmem:[#allocation8 + $0x160] sm:$0xff]
    %v1798 = vld [vmem:[#allocation8 + $0x168] sm:$0xff]
    %v1799 = vld [vmem:[#allocation8 + $0x170] sm:$0xff]
    %v1800 = vld [vmem:[#allocation8 + $0x178] sm:$0xff]
    %v1801 = vld [vmem:[#allocation8 + $0x180] sm:$0xff]
    %v1802 = vld [vmem:[#allocation8 + $0x188] sm:$0xff]
    %v1803 = vld [vmem:[#allocation8 + $0x190] sm:$0xff]
    %v1804 = vld [vmem:[#allocation8 + $0x198] sm:$0xff]
    %v1805 = vld [vmem:[#allocation8 + $0x1a0] sm:$0xff]
    %v1806 = vld [vmem:[#allocation8 + $0x1a8] sm:$0xff]
    %v1807 = vld [vmem:[#allocation8 + $0x1b0] sm:$0xff]
    %v1808 = vld [vmem:[#allocation8 + $0x1b8] sm:$0xff]
    %v1809 = vld [vmem:[#allocation8 + $0x1c0] sm:$0xff]
    %v1810 = vld [vmem:[#allocation8 + $0x1c8] sm:$0xff]
    %v1811 = vld [vmem:[#allocation8 + $0x1d0] sm:$0xff]
    %v1812 = vld [vmem:[#allocation8 + $0x1d8] sm:$0xff]
    %v1813 = vld [vmem:[#allocation8 + $0x1e0] sm:$0xff]
    %v1814 = vld [vmem:[#allocation8 + $0x1e8] sm:$0xff]
    %v1815 = vld [vmem:[#allocation8 + $0x1f0] sm:$0xff]
    %v1816 = vld [vmem:[#allocation8 + $0x1f8] sm:$0xff]
    %v1817 = vld [vmem:[%s4] sm:$0x3]
    %v1819 = vlaneseq
    %v1820 = vshrl.u32 %v1819, 7
    %v1821 = vsub.s32 0, %v1820
    %v1822 = vrot.slane %v1817, %v1821
    %v1823 = vlaneseq
    %v1824 = vshrl.u32 %v1823, 7
    %v1825 = vsub.s32 1, %v1824
    %v1826 = vrot.slane %v1817, %v1825
    %v1893 = vunpack.c.l.b16 %v1753
    %v1894 = vunpack.c.h.b16 %v1753
    %v1895 = vunpack.c.l.b16 %v1754
    %v1896 = vunpack.c.h.b16 %v1754
    %v1897 = vunpack.c.l.b16 %v1755
    %v1898 = vunpack.c.h.b16 %v1755
    %v1899 = vunpack.c.l.b16 %v1756
    %v1900 = vunpack.c.h.b16 %v1756
    %v1901 = vunpack.c.l.b16 %v1757
    %v1902 = vunpack.c.h.b16 %v1757
    %v1903 = vunpack.c.l.b16 %v1758
    %v1904 = vunpack.c.h.b16 %v1758
    %v1905 = vunpack.c.l.b16 %v1759
    %v1906 = vunpack.c.h.b16 %v1759
    %v1907 = vunpack.c.l.b16 %v1760
    %v1908 = vunpack.c.h.b16 %v1760
    %v1909 = vunpack.c.l.b16 %v1761
    %v1910 = vunpack.c.h.b16 %v1761
    %v1911 = vunpack.c.l.b16 %v1762
    %v1912 = vunpack.c.h.b16 %v1762
    %v1913 = vunpack.c.l.b16 %v1763
    %v1914 = vunpack.c.h.b16 %v1763
    %v1915 = vunpack.c.l.b16 %v1764
    %v1916 = vunpack.c.h.b16 %v1764
    %v1917 = vunpack.c.l.b16 %v1765
    %v1918 = vunpack.c.h.b16 %v1765
    %v1919 = vunpack.c.l.b16 %v1766
    %v1920 = vunpack.c.h.b16 %v1766
    %v1921 = vunpack.c.l.b16 %v1767
    %v1922 = vunpack.c.h.b16 %v1767
    %v1923 = vunpack.c.l.b16 %v1768
    %v1924 = vunpack.c.h.b16 %v1768
    %v1925 = vunpack.c.l.b16 %v1769
    %v1926 = vunpack.c.h.b16 %v1769
    %v1927 = vunpack.c.l.b16 %v1770
    %v1928 = vunpack.c.h.b16 %v1770
    %v1929 = vunpack.c.l.b16 %v1771
    %v1930 = vunpack.c.h.b16 %v1771
    %v1931 = vunpack.c.l.b16 %v1772
    %v1932 = vunpack.c.h.b16 %v1772
    %v1933 = vunpack.c.l.b16 %v1773
    %v1934 = vunpack.c.h.b16 %v1773
    %v1935 = vunpack.c.l.b16 %v1774
    %v1936 = vunpack.c.h.b16 %v1774
    %v1937 = vunpack.c.l.b16 %v1775
    %v1938 = vunpack.c.h.b16 %v1775
    %v1939 = vunpack.c.l.b16 %v1776
    %v1940 = vunpack.c.h.b16 %v1776
    %v1941 = vunpack.c.l.b16 %v1777
    %v1942 = vunpack.c.h.b16 %v1777
    %v1943 = vunpack.c.l.b16 %v1778
    %v1944 = vunpack.c.h.b16 %v1778
    %v1945 = vunpack.c.l.b16 %v1779
    %v1946 = vunpack.c.h.b16 %v1779
    %v1947 = vunpack.c.l.b16 %v1780
    %v1948 = vunpack.c.h.b16 %v1780
    %v1949 = vunpack.c.l.b16 %v1781
    %v1950 = vunpack.c.h.b16 %v1781
    %v1951 = vunpack.c.l.b16 %v1782
    %v1952 = vunpack.c.h.b16 %v1782
    %v1953 = vunpack.c.l.b16 %v1783
    %v1954 = vunpack.c.h.b16 %v1783
    %v1955 = vunpack.c.l.b16 %v1784
    %v1956 = vunpack.c.h.b16 %v1784
    %v1957 = vunpack.c.l.b16 %v1785
    %v1958 = vunpack.c.h.b16 %v1785
    %v1959 = vunpack.c.l.b16 %v1786
    %v1960 = vunpack.c.h.b16 %v1786
    %v1961 = vunpack.c.l.b16 %v1787
    %v1962 = vunpack.c.h.b16 %v1787
    %v1963 = vunpack.c.l.b16 %v1788
    %v1964 = vunpack.c.h.b16 %v1788
    %v1965 = vunpack.c.l.b16 %v1789
    %v1966 = vunpack.c.h.b16 %v1789
    %v1967 = vunpack.c.l.b16 %v1790
    %v1968 = vunpack.c.h.b16 %v1790
    %v1969 = vunpack.c.l.b16 %v1791
    %v1970 = vunpack.c.h.b16 %v1791
    %v1971 = vunpack.c.l.b16 %v1792
    %v1972 = vunpack.c.h.b16 %v1792
    %v1973 = vunpack.c.l.b16 %v1793
    %v1974 = vunpack.c.h.b16 %v1793
    %v1975 = vunpack.c.l.b16 %v1794
    %v1976 = vunpack.c.h.b16 %v1794
    %v1977 = vunpack.c.l.b16 %v1795
    %v1978 = vunpack.c.h.b16 %v1795
    %v1979 = vunpack.c.l.b16 %v1796
    %v1980 = vunpack.c.h.b16 %v1796
    %v1981 = vunpack.c.l.b16 %v1797
    %v1982 = vunpack.c.h.b16 %v1797
    %v1983 = vunpack.c.l.b16 %v1798
    %v1984 = vunpack.c.h.b16 %v1798
    %v1985 = vunpack.c.l.b16 %v1799
    %v1986 = vunpack.c.h.b16 %v1799
    %v1987 = vunpack.c.l.b16 %v1800
    %v1988 = vunpack.c.h.b16 %v1800
    %v1989 = vunpack.c.l.b16 %v1801
    %v1990 = vunpack.c.h.b16 %v1801
    %v1991 = vunpack.c.l.b16 %v1802
    %v1992 = vunpack.c.h.b16 %v1802
    %v1993 = vunpack.c.l.b16 %v1803
    %v1994 = vunpack.c.h.b16 %v1803
    %v1995 = vunpack.c.l.b16 %v1804
    %v1996 = vunpack.c.h.b16 %v1804
    %v1997 = vunpack.c.l.b16 %v1805
    %v1998 = vunpack.c.h.b16 %v1805
    %v1999 = vunpack.c.l.b16 %v1806
    %v2000 = vunpack.c.h.b16 %v1806
    %v2001 = vunpack.c.l.b16 %v1807
    %v2002 = vunpack.c.h.b16 %v1807
    %v2003 = vunpack.c.l.b16 %v1808
    %v2004 = vunpack.c.h.b16 %v1808
    %v2005 = vunpack.c.l.b16 %v1809
    %v2006 = vunpack.c.h.b16 %v1809
    %v2007 = vunpack.c.l.b16 %v1810
    %v2008 = vunpack.c.h.b16 %v1810
    %v2009 = vunpack.c.l.b16 %v1811
    %v2010 = vunpack.c.h.b16 %v1811
    %v2011 = vunpack.c.l.b16 %v1812
    %v2012 = vunpack.c.h.b16 %v1812
    %v2013 = vunpack.c.l.b16 %v1813
    %v2014 = vunpack.c.h.b16 %v1813
    %v2015 = vunpack.c.l.b16 %v1814
    %v2016 = vunpack.c.h.b16 %v1814
    %v2017 = vunpack.c.l.b16 %v1815
    %v2018 = vunpack.c.h.b16 %v1815
    %v2019 = vunpack.c.l.b16 %v1816
    %v2020 = vunpack.c.h.b16 %v1816
    %v2021 = vpack.c.b16 %v1895, %v1893
    %v2022 = vpack.c.b16 %v1896, %v1894
    %v2023 = vpack.c.b16 %v1899, %v1897
    %v2024 = vpack.c.b16 %v1900, %v1898
    %v2025 = vpack.c.b16 %v1903, %v1901
    %v2026 = vpack.c.b16 %v1904, %v1902
    %v2027 = vpack.c.b16 %v1907, %v1905
    %v2028 = vpack.c.b16 %v1908, %v1906
    %v2029 = vpack.c.b16 %v1911, %v1909
    %v2030 = vpack.c.b16 %v1912, %v1910
    %v2031 = vpack.c.b16 %v1915, %v1913
    %v2032 = vpack.c.b16 %v1916, %v1914
    %v2033 = vpack.c.b16 %v1919, %v1917
    %v2034 = vpack.c.b16 %v1920, %v1918
    %v2035 = vpack.c.b16 %v1923, %v1921
    %v2036 = vpack.c.b16 %v1924, %v1922
    %v2037 = vpack.c.b16 %v1927, %v1925
    %v2038 = vpack.c.b16 %v1928, %v1926
    %v2039 = vpack.c.b16 %v1931, %v1929
    %v2040 = vpack.c.b16 %v1932, %v1930
    %v2041 = vpack.c.b16 %v1935, %v1933
    %v2042 = vpack.c.b16 %v1936, %v1934
    %v2043 = vpack.c.b16 %v1939, %v1937
    %v2044 = vpack.c.b16 %v1940, %v1938
    %v2045 = vpack.c.b16 %v1943, %v1941
    %v2046 = vpack.c.b16 %v1944, %v1942
    %v2047 = vpack.c.b16 %v1947, %v1945
    %v2048 = vpack.c.b16 %v1948, %v1946
    %v2049 = vpack.c.b16 %v1951, %v1949
    %v2050 = vpack.c.b16 %v1952, %v1950
    %v2051 = vpack.c.b16 %v1955, %v1953
    %v2052 = vpack.c.b16 %v1956, %v1954
    %v2053 = vpack.c.b16 %v1959, %v1957
    %v2054 = vpack.c.b16 %v1960, %v1958
    %v2055 = vpack.c.b16 %v1963, %v1961
    %v2056 = vpack.c.b16 %v1964, %v1962
    %v2057 = vpack.c.b16 %v1967, %v1965
    %v2058 = vpack.c.b16 %v1968, %v1966
    %v2059 = vpack.c.b16 %v1971, %v1969
    %v2060 = vpack.c.b16 %v1972, %v1970
    %v2061 = vpack.c.b16 %v1975, %v1973
    %v2062 = vpack.c.b16 %v1976, %v1974
    %v2063 = vpack.c.b16 %v1979, %v1977
    %v2064 = vpack.c.b16 %v1980, %v1978
    %v2065 = vpack.c.b16 %v1983, %v1981
    %v2066 = vpack.c.b16 %v1984, %v1982
    %v2067 = vpack.c.b16 %v1987, %v1985
    %v2068 = vpack.c.b16 %v1988, %v1986
    %v2069 = vpack.c.b16 %v1991, %v1989
    %v2070 = vpack.c.b16 %v1992, %v1990
    %v2071 = vpack.c.b16 %v1995, %v1993
    %v2072 = vpack.c.b16 %v1996, %v1994
    %v2073 = vpack.c.b16 %v1999, %v1997
    %v2074 = vpack.c.b16 %v2000, %v1998
    %v2075 = vpack.c.b16 %v2003, %v2001
    %v2076 = vpack.c.b16 %v2004, %v2002
    %v2077 = vpack.c.b16 %v2007, %v2005
    %v2078 = vpack.c.b16 %v2008, %v2006
    %v2079 = vpack.c.b16 %v2011, %v2009
    %v2080 = vpack.c.b16 %v2012, %v2010
    %v2081 = vpack.c.b16 %v2015, %v2013
    %v2082 = vpack.c.b16 %v2016, %v2014
    %v2083 = vpack.c.b16 %v2019, %v2017
    %v2084 = vpack.c.b16 %v2020, %v2018
    %2149 = vmatprep.subr.bf16.mxu0 %v2036
    %2150 = vmatpush1.bf16.msra.mxu0 %v2035
    %2151 = vmatprep.subr.bf16.mxu0 %v2034
    %2152 = vmatpush1.bf16.msra.mxu0 %v2033
    %2153 = vmatprep.subr.bf16.mxu0 %v2032
    %2154 = vmatpush1.bf16.msra.mxu0 %v2031
    %2155 = vmatprep.subr.bf16.mxu0 %v2030
    %2156 = vmatpush1.bf16.msra.mxu0 %v2029
    %2157 = vmatprep.subr.bf16.mxu0 %v2028
    %2158 = vmatpush1.bf16.msra.mxu0 %v2027
    %2159 = vmatprep.subr.bf16.mxu0 %v2026
    %2160 = vmatpush1.bf16.msra.mxu0 %v2025
    %2161 = vmatprep.subr.bf16.mxu0 %v2024
    %2162 = vmatpush1.bf16.msra.mxu0 %v2023
    %2163 = vmatprep.subr.bf16.mxu0 %v2022
    %2164 = vmatpush1.bf16.msra.mxu0 %v2021
    %2165 = vmatprep.subr.bf16.mxu0 %v2052
    %2166 = vmatpush2.bf16.msra.mxu0 %v2051
    %2167 = vmatprep.subr.bf16.mxu0 %v2050
    %2168 = vmatpush2.bf16.msra.mxu0 %v2049
    %2169 = vmatprep.subr.bf16.mxu0 %v2048
    %2170 = vmatpush2.bf16.msra.mxu0 %v2047
    %2171 = vmatprep.subr.bf16.mxu0 %v2046
    %2172 = vmatpush2.bf16.msra.mxu0 %v2045
    %2173 = vmatprep.subr.bf16.mxu0 %v2044
    %2174 = vmatpush2.bf16.msra.mxu0 %v2043
    %2175 = vmatprep.subr.bf16.mxu0 %v2042
    %2176 = vmatpush2.bf16.msra.mxu0 %v2041
    %2177 = vmatprep.subr.bf16.mxu0 %v2040
    %2178 = vmatpush2.bf16.msra.mxu0 %v2039
    %2179 = vmatprep.subr.bf16.mxu0 %v2038
    %2180 = vmatpush2.bf16.msra.mxu0 %v2037
    %2181 = vmatprep.mubr.bf16.mxu0 %v1750
    %2182 = vmatmul.mubr.bf16.gmra.mxu0 %v1749
    %v2183 = vpop.f32.mrf.mxu0
    %v2184 = vadd.f32 %v1822, %v2183
    %v2185 = vpop.f32.mrf.mxu0
    %v2186 = vadd.f32 %v1826, %v2185
    %v2187 = vpop.f32.mrf.mxu0
    %v2188 = vpop.f32.mrf.mxu0
    %2189 = vdwg.mxu0
    %2190 = vmatprep.subr.bf16.mxu0 %v2068
    %2191 = vmatpush1.bf16.msra.mxu0 %v2067
    %2192 = vmatprep.subr.bf16.mxu0 %v2066
    %2193 = vmatpush1.bf16.msra.mxu0 %v2065
    %2194 = vmatprep.subr.bf16.mxu0 %v2064
    %2195 = vmatpush1.bf16.msra.mxu0 %v2063
    %2196 = vmatprep.subr.bf16.mxu0 %v2062
    %2197 = vmatpush1.bf16.msra.mxu0 %v2061
    %2198 = vmatprep.subr.bf16.mxu0 %v2060
    %2199 = vmatpush1.bf16.msra.mxu0 %v2059
    %2200 = vmatprep.subr.bf16.mxu0 %v2058
    %2201 = vmatpush1.bf16.msra.mxu0 %v2057
    %2202 = vmatprep.subr.bf16.mxu0 %v2056
    %2203 = vmatpush1.bf16.msra.mxu0 %v2055
    %2204 = vmatprep.subr.bf16.mxu0 %v2054
    %2205 = vmatpush1.bf16.msra.mxu0 %v2053
    %2206 = vmatprep.subr.bf16.mxu0 %v2084
    %2207 = vmatpush2.bf16.msra.mxu0 %v2083
    %2208 = vmatprep.subr.bf16.mxu0 %v2082
    %2209 = vmatpush2.bf16.msra.mxu0 %v2081
    %2210 = vmatprep.subr.bf16.mxu0 %v2080
    %2211 = vmatpush2.bf16.msra.mxu0 %v2079
    %2212 = vmatprep.subr.bf16.mxu0 %v2078
    %2213 = vmatpush2.bf16.msra.mxu0 %v2077
    %2214 = vmatprep.subr.bf16.mxu0 %v2076
    %2215 = vmatpush2.bf16.msra.mxu0 %v2075
    %2216 = vmatprep.subr.bf16.mxu0 %v2074
    %2217 = vmatpush2.bf16.msra.mxu0 %v2073
    %2218 = vmatprep.subr.bf16.mxu0 %v2072
    %2219 = vmatpush2.bf16.msra.mxu0 %v2071
    %2220 = vmatprep.subr.bf16.mxu0 %v2070
    %2221 = vmatpush2.bf16.msra.mxu0 %v2069
    %2222 = vmatprep.mubr.bf16.mxu0 %v1752
    %2223 = vmatmul.mubr.bf16.gmra.mxu0 %v1751
    %v2224 = vpop.f32.mrf.mxu0
    %v2225 = vadd.f32 %v2184, %v2224
    %v2226 = vpop.f32.mrf.mxu0
    %v2227 = vadd.f32 %v2186, %v2226
    %v2228 = vpop.f32.mrf.mxu0
    %v2229 = vpop.f32.mrf.mxu0
    %2230 = vdwg.mxu0
    %v2231 = vmax.f32 %v2225, 0.0
    %v2232 = vmax.f32 %v2227, 0.0
    %v2233 = vpack.c.bf16 %v2231, %v2231
    %v2234 = vpack.c.bf16 %v2232, %v2232
    %v2235 = vld [vmem:[#allocation10] sm:$0xf]
    %v2236 = vld [vmem:[#allocation10 + $0x4] sm:$0xf]
    %v2237 = vld [vmem:[#allocation10 + $0x8] sm:$0xf]
    %v2238 = vld [vmem:[#allocation10 + $0xc] sm:$0xf]
    %v2239 = vld [vmem:[#allocation10 + $0x10] sm:$0xf]
    %v2240 = vld [vmem:[#allocation10 + $0x14] sm:$0xf]
    %v2241 = vld [vmem:[#allocation10 + $0x18] sm:$0xf]
    %v2242 = vld [vmem:[#allocation10 + $0x1c] sm:$0xf]
    %v2243 = vld [vmem:[#allocation10 + $0x20] sm:$0xf]
    %v2244 = vld [vmem:[#allocation10 + $0x24] sm:$0xf]
    %v2245 = vld [vmem:[#allocation10 + $0x28] sm:$0xf]
    %v2246 = vld [vmem:[#allocation10 + $0x2c] sm:$0xf]
    %v2247 = vld [vmem:[#allocation10 + $0x30] sm:$0xf]
    %v2248 = vld [vmem:[#allocation10 + $0x34] sm:$0xf]
    %v2249 = vld [vmem:[#allocation10 + $0x38] sm:$0xf]
    %v2250 = vld [vmem:[#allocation10 + $0x3c] sm:$0xf]
    %v2251 = vld [vmem:[#allocation10 + $0x40] sm:$0xf]
    %v2252 = vld [vmem:[#allocation10 + $0x44] sm:$0xf]
    %v2253 = vld [vmem:[#allocation10 + $0x48] sm:$0xf]
    %v2254 = vld [vmem:[#allocation10 + $0x4c] sm:$0xf]
    %v2255 = vld [vmem:[#allocation10 + $0x50] sm:$0xf]
    %v2256 = vld [vmem:[#allocation10 + $0x54] sm:$0xf]
    %v2257 = vld [vmem:[#allocation10 + $0x58] sm:$0xf]
    %v2258 = vld [vmem:[#allocation10 + $0x5c] sm:$0xf]
    %v2259 = vld [vmem:[#allocation10 + $0x60] sm:$0xf]
    %v2260 = vld [vmem:[#allocation10 + $0x64] sm:$0xf]
    %v2261 = vld [vmem:[#allocation10 + $0x68] sm:$0xf]
    %v2262 = vld [vmem:[#allocation10 + $0x6c] sm:$0xf]
    %v2263 = vld [vmem:[#allocation10 + $0x70] sm:$0xf]
    %v2264 = vld [vmem:[#allocation10 + $0x74] sm:$0xf]
    %v2265 = vld [vmem:[#allocation10 + $0x78] sm:$0xf]
    %v2266 = vld [vmem:[#allocation10 + $0x7c] sm:$0xf]
    %v2267 = vld [vmem:[%s6] sm:$0x1]
    %v2269 = vlaneseq
    %v2270 = vshrl.u32 %v2269, 7
    %v2271 = vsub.s32 0, %v2270
    %v2272 = vrot.slane %v2267, %v2271
    %v2306 = vunpack.c.l.b16 %v2235
    %v2307 = vunpack.c.l.b16 %v2236
    %v2308 = vunpack.c.l.b16 %v2237
    %v2309 = vunpack.c.l.b16 %v2238
    %v2310 = vunpack.c.l.b16 %v2239
    %v2311 = vunpack.c.l.b16 %v2240
    %v2312 = vunpack.c.l.b16 %v2241
    %v2313 = vunpack.c.l.b16 %v2242
    %v2314 = vunpack.c.l.b16 %v2243
    %v2315 = vunpack.c.l.b16 %v2244
    %v2316 = vunpack.c.l.b16 %v2245
    %v2317 = vunpack.c.l.b16 %v2246
    %v2318 = vunpack.c.l.b16 %v2247
    %v2319 = vunpack.c.l.b16 %v2248
    %v2320 = vunpack.c.l.b16 %v2249
    %v2321 = vunpack.c.l.b16 %v2250
    %v2322 = vunpack.c.l.b16 %v2251
    %v2323 = vunpack.c.l.b16 %v2252
    %v2324 = vunpack.c.l.b16 %v2253
    %v2325 = vunpack.c.l.b16 %v2254
    %v2326 = vunpack.c.l.b16 %v2255
    %v2327 = vunpack.c.l.b16 %v2256
    %v2328 = vunpack.c.l.b16 %v2257
    %v2329 = vunpack.c.l.b16 %v2258
    %v2330 = vunpack.c.l.b16 %v2259
    %v2331 = vunpack.c.l.b16 %v2260
    %v2332 = vunpack.c.l.b16 %v2261
    %v2333 = vunpack.c.l.b16 %v2262
    %v2334 = vunpack.c.l.b16 %v2263
    %v2335 = vunpack.c.l.b16 %v2264
    %v2336 = vunpack.c.l.b16 %v2265
    %v2337 = vunpack.c.l.b16 %v2266
    %v2338 = vpack.c.b16 %v2307, %v2306
    %v2339 = vpack.c.b16 %v2309, %v2308
    %v2340 = vpack.c.b16 %v2311, %v2310
    %v2341 = vpack.c.b16 %v2313, %v2312
    %v2342 = vpack.c.b16 %v2315, %v2314
    %v2343 = vpack.c.b16 %v2317, %v2316
    %v2344 = vpack.c.b16 %v2319, %v2318
    %v2345 = vpack.c.b16 %v2321, %v2320
    %v2346 = vpack.c.b16 %v2323, %v2322
    %v2347 = vpack.c.b16 %v2325, %v2324
    %v2348 = vpack.c.b16 %v2327, %v2326
    %v2349 = vpack.c.b16 %v2329, %v2328
    %v2350 = vpack.c.b16 %v2331, %v2330
    %v2351 = vpack.c.b16 %v2333, %v2332
    %v2352 = vpack.c.b16 %v2335, %v2334
    %v2353 = vpack.c.b16 %v2337, %v2336
    %2370 = vmatprep.subr.bf16.mxu0 0
    %2371 = vmatpush1.bf16.msra.mxu0 %v2345
    %2372 = vmatprep.subr.bf16.mxu0 0
    %2373 = vmatpush1.bf16.msra.mxu0 %v2344
    %2374 = vmatprep.subr.bf16.mxu0 0
    %2375 = vmatpush1.bf16.msra.mxu0 %v2343
    %2376 = vmatprep.subr.bf16.mxu0 0
    %2377 = vmatpush1.bf16.msra.mxu0 %v2342
    %2378 = vmatprep.subr.bf16.mxu0 0
    %2379 = vmatpush1.bf16.msra.mxu0 %v2341
    %2380 = vmatprep.subr.bf16.mxu0 0
    %2381 = vmatpush1.bf16.msra.mxu0 %v2340
    %2382 = vmatprep.subr.bf16.mxu0 0
    %2383 = vmatpush1.bf16.msra.mxu0 %v2339
    %2384 = vmatprep.subr.bf16.mxu0 0
    %2385 = vmatpush1.bf16.msra.mxu0 %v2338
    %2386 = vmatprep.subr.bf16.mxu0 0
    %2387 = vmatpush2.bf16.msra.mxu0 %v2353
    %2388 = vmatprep.subr.bf16.mxu0 0
    %2389 = vmatpush2.bf16.msra.mxu0 %v2352
    %2390 = vmatprep.subr.bf16.mxu0 0
    %2391 = vmatpush2.bf16.msra.mxu0 %v2351
    %2392 = vmatprep.subr.bf16.mxu0 0
    %2393 = vmatpush2.bf16.msra.mxu0 %v2350
    %2394 = vmatprep.subr.bf16.mxu0 0
    %2395 = vmatpush2.bf16.msra.mxu0 %v2349
    %2396 = vmatprep.subr.bf16.mxu0 0
    %2397 = vmatpush2.bf16.msra.mxu0 %v2348
    %2398 = vmatprep.subr.bf16.mxu0 0
    %2399 = vmatpush2.bf16.msra.mxu0 %v2347
    %2400 = vmatprep.subr.bf16.mxu0 0
    %2401 = vmatpush2.bf16.msra.mxu0 %v2346
    %2402 = vmatprep.mubr.bf16.mxu0 %v2234
    %2403 = vmatmul.mubr.bf16.gmra.mxu0 %v2233
    %v2404 = vpop.f32.mrf.mxu0
    %v2405 = vadd.f32 %v2272, %v2404
    %v2406 = vpop.f32.mrf.mxu0
    %v2407 = vpop.f32.mrf.mxu0
    %v2408 = vpop.f32.mrf.mxu0
    %2409 = vdwg.mxu0
    %v2410 = vmax.f32 %v2405, 0.0
    %v2411 = vpack.c.bf16 %v2410, %v2410
    %v2412 = vld [vmem:[#allocation11] sm:$0xf]
    %v2413 = vld [vmem:[#allocation11 + $0x4] sm:$0xf]
    %v2414 = vld [vmem:[#allocation11 + $0x8] sm:$0xf]
    %v2415 = vld [vmem:[#allocation11 + $0xc] sm:$0xf]
    %v2416 = vld [vmem:[#allocation11 + $0x10] sm:$0xf]
    %v2417 = vld [vmem:[#allocation11 + $0x14] sm:$0xf]
    %v2418 = vld [vmem:[#allocation11 + $0x18] sm:$0xf]
    %v2419 = vld [vmem:[#allocation11 + $0x1c] sm:$0xf]
    %v2420 = vld [vmem:[#allocation11 + $0x20] sm:$0xf]
    %v2421 = vld [vmem:[#allocation11 + $0x24] sm:$0xf]
    %v2422 = vld [vmem:[#allocation11 + $0x28] sm:$0xf]
    %v2423 = vld [vmem:[#allocation11 + $0x2c] sm:$0xf]
    %v2424 = vld [vmem:[#allocation11 + $0x30] sm:$0xf]
    %v2425 = vld [vmem:[#allocation11 + $0x34] sm:$0xf]
    %v2426 = vld [vmem:[#allocation11 + $0x38] sm:$0xf]
    %v2427 = vld [vmem:[#allocation11 + $0x3c] sm:$0xf]
    %v2428 = vld [vmem:[%s8] sm:$0x1]
    %v2430 = vlaneseq
    %v2431 = vshrl.u32 %v2430, 7
    %v2432 = vsub.s32 0, %v2431
    %v2433 = vrot.slane %v2428, %v2432
    %v2451 = vunpack.c.l.b16 %v2412
    %v2452 = vunpack.c.l.b16 %v2413
    %v2453 = vunpack.c.l.b16 %v2414
    %v2454 = vunpack.c.l.b16 %v2415
    %v2455 = vunpack.c.l.b16 %v2416
    %v2456 = vunpack.c.l.b16 %v2417
    %v2457 = vunpack.c.l.b16 %v2418
    %v2458 = vunpack.c.l.b16 %v2419
    %v2459 = vunpack.c.l.b16 %v2420
    %v2460 = vunpack.c.l.b16 %v2421
    %v2461 = vunpack.c.l.b16 %v2422
    %v2462 = vunpack.c.l.b16 %v2423
    %v2463 = vunpack.c.l.b16 %v2424
    %v2464 = vunpack.c.l.b16 %v2425
    %v2465 = vunpack.c.l.b16 %v2426
    %v2466 = vunpack.c.l.b16 %v2427
    %v2467 = vpack.c.b16 %v2452, %v2451
    %v2468 = vpack.c.b16 %v2454, %v2453
    %v2469 = vpack.c.b16 %v2456, %v2455
    %v2470 = vpack.c.b16 %v2458, %v2457
    %v2471 = vpack.c.b16 %v2460, %v2459
    %v2472 = vpack.c.b16 %v2462, %v2461
    %v2473 = vpack.c.b16 %v2464, %v2463
    %v2474 = vpack.c.b16 %v2466, %v2465
    %2483 = vmatprep.subr.bf16.mxu0 0
    %2484 = vmatpush1.bf16.msra.mxu0 %v2474
    %2485 = vmatprep.subr.bf16.mxu0 0
    %2486 = vmatpush1.bf16.msra.mxu0 %v2473
    %2487 = vmatprep.subr.bf16.mxu0 0
    %2488 = vmatpush1.bf16.msra.mxu0 %v2472
    %2489 = vmatprep.subr.bf16.mxu0 0
    %2490 = vmatpush1.bf16.msra.mxu0 %v2471
    %2491 = vmatprep.subr.bf16.mxu0 0
    %2492 = vmatpush1.bf16.msra.mxu0 %v2470
    %2493 = vmatprep.subr.bf16.mxu0 0
    %2494 = vmatpush1.bf16.msra.mxu0 %v2469
    %2495 = vmatprep.subr.bf16.mxu0 0
    %2496 = vmatpush1.bf16.msra.mxu0 %v2468
    %2497 = vmatprep.subr.bf16.mxu0 0
    %2498 = vmatpush1.bf16.msra.mxu0 %v2467
    %2499 = vmatprep.subr.bf16.mxu0 0
    %2500 = vmatpush2.bf16.msra.mxu0 0
    %2501 = vmatprep.subr.bf16.mxu0 0
    %2502 = vmatpush2.bf16.msra.mxu0 0
    %2503 = vmatprep.subr.bf16.mxu0 0
    %2504 = vmatpush2.bf16.msra.mxu0 0
    %2505 = vmatprep.subr.bf16.mxu0 0
    %2506 = vmatpush2.bf16.msra.mxu0 0
    %2507 = vmatprep.subr.bf16.mxu0 0
    %2508 = vmatpush2.bf16.msra.mxu0 0
    %2509 = vmatprep.subr.bf16.mxu0 0
    %2510 = vmatpush2.bf16.msra.mxu0 0
    %2511 = vmatprep.subr.bf16.mxu0 0
    %2512 = vmatpush2.bf16.msra.mxu0 0
    %2513 = vmatprep.subr.bf16.mxu0 0
    %2514 = vmatpush2.bf16.msra.mxu0 0
    %2515 = vmatprep.mubr.bf16.mxu0 0
    %2516 = vmatmul.mubr.bf16.gmra.mxu0 %v2411
    %v2517 = vpop.f32.mrf.mxu0
    %v2518 = vadd.f32 %v2433, %v2517
    %v2519 = vpop.f32.mrf.mxu0
    %v2520 = vpop.f32.mrf.mxu0
    %v2521 = vpop.f32.mrf.mxu0
    %2522 = vdwg.mxu0
    %2523 = vst [vmem:[#allocation13] sm:$0xff] %v2518
    // Predicated region
    $region62: #{tpu_custom_call.1} parent=1 // pred_check
      _
    $region63: #{tpu_custom_call.1} parent=1 // pred_check_branch
      %2525 = sbr.rel (0) target = $region65
    $region64: #{tpu_custom_call.1} parent=1 // pred_region
      %s2527 = ssub.s32 128, 32
      %2528 = vsyncadd [#allocation4], %s2527
      %s2529 = sshll.u32 [#allocation13], 4
      %s2530 = int_to_ptr.vmem [resolvable:$true] %s2529
      %2535 = dma.vmem_to_hbm [thread:$0]  %s2530, 32, %s9, [#allocation4], 32, 32, 2
    $region65: #{tpu_custom_call.1} parent=1 // pred_fallthru
      _
    // Predicated region
    $region66: #{tpu_custom_call.1} parent=1 // pred_check
      _
    $region67: #{tpu_custom_call.1} parent=1 // pred_check_branch
      %2537 = sbr.rel (0) target = $region69
    $region68: #{tpu_custom_call.1} parent=1 // pred_region
      %2538 = dma.done [#allocation4], 128
    $region69: #{tpu_custom_call.1} parent=1 // pred_fallthru
      _
    %2539 = vsyncpa [#allocation3], 1
    %2540 = vsyncpa [#allocation6], 1
    %2541 = vsyncpa [#allocation9], 1
    %2542 = vsyncpa [#allocation12], 1
    %2543 = vsyncpa [#allocation4], 1

</llo_original>
